<compile_context>
chip_gen: v5e
topology: v5e:2x2
jax: 0.10.0
libtpu: 0.0.40
codegen_flags: <defaults>
</compile_context>

<pallas_src>
import jax
import jax.numpy as jnp
import numpy as np
from jax import lax
from jax.experimental import pallas as pl
from jax.experimental.pallas import tpu as pltpu


def _round_up(v, m):
    return (v + m - 1) // m * m


def _pick_batch_tile(n, *, s_pad, lq_pad, c, dout, x_bytes, cdt_bytes,
                     budget_bytes, cap):
    """Largest batch tile whose estimated per-step VMEM footprint fits."""
    # Constant operands (weights / pos / bias) are double-buffered by the
    # pipeline even though their block index never changes.
    const = 2 * ((3 * c * c + c * dout) * cdt_bytes
                 + (2 * s_pad * c + lq_pad * c + dout) * 4)

    def usage(bt):
        x_blk = 2 * bt * s_pad * c * x_bytes            # double-buffered input
        o_blk = 2 * bt * lq_pad * dout * 4              # double-buffered output
        scratch = bt * (2 * s_pad + lq_pad) * c * cdt_bytes   # q/k/v scratch
        live = 3 * bt * s_pad * c * 4 + 2 * bt * lq_pad * dout * 4  # f32 temps
        return const + x_blk + o_blk + scratch + live

    bt = 1
    for cand in range(1, max(1, min(cap, n)) + 1):
        if usage(cand) <= budget_bytes:
            bt = cand
    # If the whole batch fits in one grid step, split it so a 2-TensorCore
    # chip (v7x) can shard the ("parallel",) batch axis across both cores.
    if n >= 2 and bt >= n:
        bt = (n + 1) // 2
    return bt


def _make_kernel(*, batch_tile, hw, s_pad, channels, num_heads, head_dim,
                 lq_pad, out_dim, compute_dtype, approx_softmax):
    """One grid step == `batch_tile` images."""
    cdt = compute_dtype
    f32 = jnp.float32
    inv_hw = 1.0 / float(hw)
    bt = batch_tile

    def kernel(x_ref, kpos_ref, vpos_ref, qb_ref,
               wq_ref, wk_ref, wv_ref, wc_ref, bc_ref,
               o_ref, q_buf, k_buf, v_buf):
        # x_ref: (Bt, S_pad, C) in compute dtype; rows >= hw are exact zeros.
        x = x_ref[...]
        xf = x.reshape(bt * s_pad, channels)

        # ---- one tall MXU matmul per projection (rows = Bt*S_pad) ---------
        k_tok = jnp.dot(xf, wk_ref[...], preferred_element_type=f32)
        v_tok = jnp.dot(xf, wv_ref[...], preferred_element_type=f32)
        k_tok = k_tok.reshape(bt, s_pad, channels)
        v_tok = v_tok.reshape(bt, s_pad, channels)

        # Mean token: mean of projections == projection of the mean
        # (zero pad rows contribute exactly 0 to the sums).
        x_mean = jnp.sum(x.astype(f32), axis=1) * inv_hw       # (Bt, C)
        k_mean = jnp.sum(k_tok, axis=1) * inv_hw
        v_mean = jnp.sum(v_tok, axis=1) * inv_hw

        # ---- dense K / V assembly: tokens first, mean row at index hw -----
        # (key order is irrelevant as long as K and V agree; kpos/vpos already
        #  contain pos_emb @ W^T + bias, zeros on the pad rows.)
        srow = lax.broadcasted_iota(jnp.int32, (bt, s_pad, channels), 1)
        is_mean = srow == hw
        k_full = (k_tok + kpos_ref[...][None]
                  + jnp.where(is_mean, k_mean[:, None, :], 0.0))
        v_full = (v_tok + vpos_ref[...][None]
                  + jnp.where(is_mean, v_mean[:, None, :], 0.0))
        k_buf[...] = k_full.astype(cdt)        # single dense store
        v_buf[...] = v_full.astype(cdt)        # single dense store

        # ---- queries: constant rows + batch term on row 0 only ------------
        q_cls = jnp.dot(x_mean.astype(cdt), wq_ref[...],
                        preferred_element_type=f32)             # (Bt, C)
        qrow = lax.broadcasted_iota(jnp.int32, (bt, lq_pad, channels), 1)
        q_all = qb_ref[...][None] + jnp.where(qrow == 0, q_cls[:, None, :], 0.0)
        q_buf[...] = q_all.astype(cdt)         # single dense store

        # Additive softmax mask for padded key rows (> hw).  Hoisted out of
        # the head loop (broadcasts are not CSE'd).
        kcol = lax.broadcasted_iota(jnp.int32, (1, lq_pad, s_pad), 2)
        key_bias = jnp.where(kcol > hw, -1e30, 0.0).astype(f32)

        # ---- per-head attention; output projection accumulated per head ---
        # (no attn scratch round-trip, no lane-offset masked stores; the only
        #  store of the result is one dense (Bt, Lq_pad, Dout) write below.)
        out_acc = jnp.zeros((bt * lq_pad, out_dim), f32)
        for h in range(num_heads):
            lo = h * head_dim
            hi = lo + head_dim
            qh = q_buf[:, :, lo:hi]                         # (Bt, Lq_pad, hd)
            kh = k_buf[:, :, lo:hi]                         # (Bt, S_pad, hd)
            vh = v_buf[:, :, lo:hi]
            s = jnp.einsum('bqd,bkd->bqk', qh, kh,
                           preferred_element_type=f32)      # (Bt, Lq_pad, S_pad)
            s = s + key_bias
            s = s - jnp.max(s, axis=-1, keepdims=True)
            p = jnp.exp(s)
            denom = jnp.sum(p, axis=-1, keepdims=True)
            if approx_softmax:
                p = p * pl.reciprocal(denom, approx=True)   # EUP slot
            else:
                p = p / denom
            ctx = jnp.einsum('bqk,bkd->bqd', p.astype(cdt), vh,
                             preferred_element_type=f32)    # (Bt, Lq_pad, hd)
            ctx2 = ctx.astype(cdt).reshape(bt * lq_pad, head_dim)
            wc_h = wc_ref[lo:hi, :]                         # aligned sublane slice
            out_acc = out_acc + jnp.dot(ctx2, wc_h, preferred_element_type=f32)

        out = out_acc + bc_ref[...]
        o_ref[...] = out.reshape(bt, lq_pad, out_dim).astype(o_ref.dtype)

    return kernel


def attention_pool2d_query(x, params, num_heads, *,
                           compute_dtype=jnp.bfloat16,
                           approx_softmax=True,
                           max_batch_tile=512,
                           vmem_budget_bytes=36 * 2**20,
                           vmem_limit_bytes=48 * 2**20):
    """x: (N, C, H, W) float32 -> (1 + n_query, N, Dout), matching PyTorch.

    compute_dtype controls the MXU input dtype (accumulation / softmax stay
    f32).  Defaults are sized so the same config runs on v5e / v6e / v7x
    (v7x has only 64 MiB VMEM per TensorCore); on v5e/v6e both VMEM knobs can
    be raised towards ~100 MiB for a bigger batch tile.
    """
    N, C, H, W = x.shape
    HW = H * W
    S = HW + 1
    n_query = params["query_emb"].shape[0]
    Lq = 1 + n_query
    Lq_pad = max(_round_up(Lq, 8), 8)
    S_pad = max(_round_up(S, 8), 8)
    Dout = params["c_w"].shape[0]
    assert C % num_heads == 0
    head_dim = C // num_heads
    assert params["pos_emb"].shape[0] == S

    f32 = jnp.float32
    cdt = compute_dtype
    cdt_bytes = jnp.dtype(cdt).itemsize
    scale = head_dim ** -0.5

    # ---- constant parameter transforms (once, outside the kernel) ---------
    wqT = params["q_w"].T.astype(f32) * scale          # scale folded into Wq/bq
    wkT = params["k_w"].T.astype(f32)
    wvT = params["v_w"].T.astype(f32)
    wcT = params["c_w"].T.astype(f32)
    bq_s = params["q_b"].astype(f32) * scale

    pos = params["pos_emb"].astype(f32)                              # (S, C)
    kpos = pos @ wkT + params["k_b"][None, :]
    vpos = pos @ wvT + params["v_b"][None, :]
    zpad = jnp.zeros((S_pad - S, C), f32)
    # Key order inside the kernel: [tokens 0..HW-1, mean, padding].
    kpos_full = jnp.concatenate([kpos[1:], kpos[0:1], zpad], axis=0)
    vpos_full = jnp.concatenate([vpos[1:], vpos[0:1], zpad], axis=0)

    q_cls_const = pos[0:1] @ wqT + bq_s[None, :]                     # (1, C)
    q_learned = params["query_emb"][:, 0, :].astype(f32) @ wqT + bq_s[None, :]
    q_base = jnp.concatenate(
        [q_cls_const, q_learned, jnp.zeros((Lq_pad - Lq, C), f32)], axis=0)

    bc = params["c_b"].astype(f32)[None, :]                          # (1, Dout)

    wq_c, wk_c, wv_c, wc_c = (w.astype(cdt) for w in (wqT, wkT, wvT, wcT))

    # ---- VMEM-budgeted batch tile; grid = cdiv(N, Bt) with padded batch ---
    Bt = _pick_batch_tile(N, s_pad=S_pad, lq_pad=Lq_pad, c=C, dout=Dout,
                          x_bytes=cdt_bytes, cdt_bytes=cdt_bytes,
                          budget_bytes=vmem_budget_bytes, cap=max_batch_tile)
    n_steps = pl.cdiv(N, Bt)
    N_pad = n_steps * Bt

    # (N, C, H, W) -> (N, HW, C) in compute dtype; pad tokens to S_pad rows
    # and the batch to N_pad with zeros (pad rows/images never reach the
    # result: pad keys are masked, pad batch rows are sliced off).
    # NOTE: at production scale this transpose should be folded into the
    # kernel (consume native (Bt, C, HW) blocks) to avoid the extra HBM pass.
    x_tok = jnp.transpose(x.reshape(N, C, HW), (0, 2, 1)).astype(cdt)
    x_tok = jnp.pad(x_tok, ((0, N_pad - N), (0, S_pad - HW), (0, 0)))

    kernel = _make_kernel(batch_tile=Bt, hw=HW, s_pad=S_pad, channels=C,
                          num_heads=num_heads, head_dim=head_dim,
                          lq_pad=Lq_pad, out_dim=Dout, compute_dtype=cdt,
                          approx_softmax=approx_softmax)

    out = pl.pallas_call(
        kernel,
        out_shape=jax.ShapeDtypeStruct((N_pad, Lq_pad, Dout), x.dtype),
        grid_spec=pltpu.PrefetchScalarGridSpec(
            num_scalar_prefetch=0,
            grid=(n_steps,),
            in_specs=[
                pl.BlockSpec((Bt, S_pad, C), lambda i: (i, 0, 0)),   # tokens
                pl.BlockSpec((S_pad, C), lambda i: (0, 0)),          # K pos+bias
                pl.BlockSpec((S_pad, C), lambda i: (0, 0)),          # V pos+bias
                pl.BlockSpec((Lq_pad, C), lambda i: (0, 0)),         # query base
                pl.BlockSpec((C, C), lambda i: (0, 0)),              # Wq^T*scale
                pl.BlockSpec((C, C), lambda i: (0, 0)),              # Wk^T
                pl.BlockSpec((C, C), lambda i: (0, 0)),              # Wv^T
                pl.BlockSpec((C, Dout), lambda i: (0, 0)),           # Wc^T
                pl.BlockSpec((1, Dout), lambda i: (0, 0)),           # c bias
            ],
            out_specs=pl.BlockSpec((Bt, Lq_pad, Dout), lambda i: (i, 0, 0)),
            scratch_shapes=[
                pltpu.VMEM((Bt, Lq_pad, C), cdt),    # Q (dense)
                pltpu.VMEM((Bt, S_pad, C), cdt),     # K (tokens + mean + pad)
                pltpu.VMEM((Bt, S_pad, C), cdt),     # V (tokens + mean + pad)
            ],
        ),
        compiler_params=pltpu.CompilerParams(
            dimension_semantics=("parallel",),
            vmem_limit_bytes=vmem_limit_bytes),
    )(x_tok, kpos_full, vpos_full, q_base, wq_c, wk_c, wv_c, wc_c, bc)

    out = out[:N, :Lq, :]                      # drop batch / query padding
    return jnp.transpose(out, (1, 0, 2))       # (Lq, N, Dout), like PyTorch


def reference_jax(x, params, num_heads):
    """Pure-JAX port of the PyTorch forward, for verification."""
    N, C, H, W = x.shape
    xf = jnp.transpose(x.reshape(N, C, H * W), (2, 0, 1))             # (HW, N, C)
    xm = jnp.concatenate([xf.mean(axis=0, keepdims=True), xf], axis=0)
    xm = xm + params["pos_emb"][:, None, :]
    n_query = params["query_emb"].shape[0]
    q = jnp.concatenate(
        [xm[:1], jnp.broadcast_to(params["query_emb"], (n_query, N, C))], axis=0)

    hd = C // num_heads
    Q = (q @ params["q_w"].T + params["q_b"]) * (hd ** -0.5)
    K = xm @ params["k_w"].T + params["k_b"]
    V = xm @ params["v_w"].T + params["v_b"]

    Lq, S = Q.shape[0], K.shape[0]
    Qh = Q.reshape(Lq, N, num_heads, hd).transpose(1, 2, 0, 3)        # (N,H,Lq,hd)
    Kh = K.reshape(S, N, num_heads, hd).transpose(1, 2, 0, 3)
    Vh = V.reshape(S, N, num_heads, hd).transpose(1, 2, 0, 3)
    scores = jnp.einsum('nhqd,nhkd->nhqk', Qh, Kh)
    p = jax.nn.softmax(scores, axis=-1)
    o = jnp.einsum('nhqk,nhkd->nhqd', p, Vh)
    o = o.transpose(2, 0, 1, 3).reshape(Lq, N, C)
    return o @ params["c_w"].T + params["c_b"]


def init_params(key, spacial_dim, embed_dim, output_dim, n_query):
    ks = jax.random.split(key, 10)
    s = 1.0 / (embed_dim ** 0.5)
    return {
        "query_emb": jax.random.normal(ks[0], (n_query, 1, embed_dim), jnp.float32) * s,
        "pos_emb": jax.random.normal(ks[1], (spacial_dim ** 2 + 1, embed_dim), jnp.float32) * s,
        "q_w": jax.random.normal(ks[2], (embed_dim, embed_dim), jnp.float32) * s,
        "q_b": jax.random.normal(ks[3], (embed_dim,), jnp.float32) * 0.1,
        "k_w": jax.random.normal(ks[4], (embed_dim, embed_dim), jnp.float32) * s,
        "k_b": jax.random.normal(ks[5], (embed_dim,), jnp.float32) * 0.1,
        "v_w": jax.random.normal(ks[6], (embed_dim, embed_dim), jnp.float32) * s,
        "v_b": jax.random.normal(ks[7], (embed_dim,), jnp.float32) * 0.1,
        "c_w": jax.random.normal(ks[8], (output_dim, embed_dim), jnp.float32) * s,
        "c_b": jax.random.normal(ks[9], (output_dim,), jnp.float32) * 0.1,
    }


if __name__ == "__main__":
    # Small shapes consistent with the module: (N, C=embed_dim, H=W=spacial_dim)
    batch, embed_dim, spacial_dim = 2, 32, 4
    num_heads, output_dim, n_query = 4, 64, 8

    key = jax.random.PRNGKey(0)
    kx, kp = jax.random.split(key)
    x = jax.random.normal(kx, (batch, embed_dim, spacial_dim, spacial_dim), jnp.float32)
    params = init_params(kp, spacial_dim, embed_dim, output_dim, n_query)

    ref = jax.block_until_ready(reference_jax(x, params, num_heads))

    # f32 MXU inputs + exact softmax normalization.
    out_f32 = attention_pool2d_query(x, params, num_heads,
                                     compute_dtype=jnp.float32,
                                     approx_softmax=False)
    out_f32 = jax.block_until_ready(out_f32)
    assert out_f32.shape == (1 + n_query, batch, output_dim), out_f32.shape
    np.testing.assert_allclose(np.asarray(out_f32), np.asarray(ref),
                               rtol=2e-2, atol=2e-2)

    # Default fast path: bf16 MXU inputs + approx reciprocal (f32 accumulation).
    out_bf16 = jax.block_until_ready(attention_pool2d_query(x, params, num_heads))
    assert out_bf16.shape == (1 + n_query, batch, output_dim), out_bf16.shape
    np.testing.assert_allclose(np.asarray(out_bf16), np.asarray(ref),
                               rtol=6e-2, atol=6e-2)

    print("KERNEL_OK")
</pallas_src>

<mosaic_0001>
module attributes {stable_mosaic.version = 11 : i64} {
  func.func @kernel(%arg0: i32, %arg1: memref<1x24x32xf32, #tpu.memory_space<vmem>>, %arg2: memref<24x32xf32, #tpu.memory_space<vmem>>, %arg3: memref<24x32xf32, #tpu.memory_space<vmem>>, %arg4: memref<16x32xf32, #tpu.memory_space<vmem>>, %arg5: memref<32x32xf32, #tpu.memory_space<vmem>>, %arg6: memref<32x32xf32, #tpu.memory_space<vmem>>, %arg7: memref<32x32xf32, #tpu.memory_space<vmem>>, %arg8: memref<32x64xf32, #tpu.memory_space<vmem>>, %arg9: memref<1x64xf32, #tpu.memory_space<vmem>>, %arg10: memref<1x16x64xf32, #tpu.memory_space<vmem>>, %arg11: memref<1x16x32xf32, #tpu.memory_space<vmem>>, %arg12: memref<1x24x32xf32, #tpu.memory_space<vmem>>, %arg13: memref<1x24x32xf32, #tpu.memory_space<vmem>>) attributes {dimension_semantics = [#tpu.dimension_semantics<parallel>], iteration_bounds = array<i64: 2>, scalar_prefetch = 0 : i64, scratch_operands = 3 : i64, tpu.core_type = #tpu.core_type<tc>, window_params = [{transform_indices = @transform_0, window_bounds = array<i64: 1, 24, 32>}, {pipeline_mode = #tpu.pipeline_mode<synchronous>, transform_indices = @transform_1, window_bounds = array<i64: 24, 32>}, {pipeline_mode = #tpu.pipeline_mode<synchronous>, transform_indices = @transform_2, window_bounds = array<i64: 24, 32>}, {pipeline_mode = #tpu.pipeline_mode<synchronous>, transform_indices = @transform_3, window_bounds = array<i64: 16, 32>}, {pipeline_mode = #tpu.pipeline_mode<synchronous>, transform_indices = @transform_4, window_bounds = array<i64: 32, 32>}, {pipeline_mode = #tpu.pipeline_mode<synchronous>, transform_indices = @transform_5, window_bounds = array<i64: 32, 32>}, {pipeline_mode = #tpu.pipeline_mode<synchronous>, transform_indices = @transform_6, window_bounds = array<i64: 32, 32>}, {pipeline_mode = #tpu.pipeline_mode<synchronous>, transform_indices = @transform_7, window_bounds = array<i64: 32, 64>}, {pipeline_mode = #tpu.pipeline_mode<synchronous>, transform_indices = @transform_8, window_bounds = array<i64: 1, 64>}, {transform_indices = @transform_9, window_bounds = array<i64: 1, 16, 64>}]} {
    %c0 = arith.constant 0 : index
    %c0_0 = arith.constant 0 : index
    %c0_1 = arith.constant 0 : index
    %0 = vector.load %arg1[%c0, %c0_0, %c0_1] : memref<1x24x32xf32, #tpu.memory_space<vmem>>, vector<1x24x32xf32>
    %1 = vector.shape_cast %0 : vector<1x24x32xf32> to vector<24x32xf32>
    %c0_2 = arith.constant 0 : index
    %c0_3 = arith.constant 0 : index
    %2 = vector.load %arg6[%c0_2, %c0_3] : memref<32x32xf32, #tpu.memory_space<vmem>>, vector<32x32xf32>
    %cst = arith.constant dense<0.000000e+00> : vector<24x32xf32>
    %3 = tpu.matmul %1, %2, %cst {dimension_numbers = #tpu.dot_dimension_numbers<[1], [0], [0], [1], [0, 0, 1, 1], [], []>} : vector<24x32xf32>, vector<32x32xf32>, vector<24x32xf32> -> vector<24x32xf32>
    %c0_4 = arith.constant 0 : index
    %c0_5 = arith.constant 0 : index
    %4 = vector.load %arg7[%c0_4, %c0_5] : memref<32x32xf32, #tpu.memory_space<vmem>>, vector<32x32xf32>
    %cst_6 = arith.constant dense<0.000000e+00> : vector<24x32xf32>
    %5 = tpu.matmul %1, %4, %cst_6 {dimension_numbers = #tpu.dot_dimension_numbers<[1], [0], [0], [1], [0, 0, 1, 1], [], []>} : vector<24x32xf32>, vector<32x32xf32>, vector<24x32xf32> -> vector<24x32xf32>
    %6 = vector.shape_cast %3 : vector<24x32xf32> to vector<1x24x32xf32>
    %7 = vector.shape_cast %5 : vector<24x32xf32> to vector<1x24x32xf32>
    %cst_7 = arith.constant dense<0.000000e+00> : vector<1x32xf32>
    %8 = vector.multi_reduction <add>, %0, %cst_7 [1] : vector<1x24x32xf32> to vector<1x32xf32>
    %cst_8 = arith.constant 6.250000e-02 : f32
    %9 = vector.broadcast %cst_8 : f32 to vector<1x32xf32>
    %10 = arith.mulf %8, %9 : vector<1x32xf32>
    %cst_9 = arith.constant dense<0.000000e+00> : vector<1x32xf32>
    %11 = vector.multi_reduction <add>, %6, %cst_9 [1] : vector<1x24x32xf32> to vector<1x32xf32>
    %cst_10 = arith.constant 6.250000e-02 : f32
    %12 = vector.broadcast %cst_10 : f32 to vector<1x32xf32>
    %13 = arith.mulf %11, %12 : vector<1x32xf32>
    %cst_11 = arith.constant dense<0.000000e+00> : vector<1x32xf32>
    %14 = vector.multi_reduction <add>, %7, %cst_11 [1] : vector<1x24x32xf32> to vector<1x32xf32>
    %cst_12 = arith.constant 6.250000e-02 : f32
    %15 = vector.broadcast %cst_12 : f32 to vector<1x32xf32>
    %16 = arith.mulf %14, %15 : vector<1x32xf32>
    %17 = tpu.iota {dimensions = array<i32: 1>} : vector<1x24x32xi32>
    %c16_i32 = arith.constant 16 : i32
    %18 = vector.broadcast %c16_i32 : i32 to vector<1x24x32xi32>
    %19 = arith.cmpi eq, %17, %18 : vector<1x24x32xi32>
    %c0_13 = arith.constant 0 : index
    %c0_14 = arith.constant 0 : index
    %20 = vector.load %arg2[%c0_13, %c0_14] : memref<24x32xf32, #tpu.memory_space<vmem>>, vector<24x32xf32>
    %21 = vector.shape_cast %20 : vector<24x32xf32> to vector<1x24x32xf32>
    %22 = arith.addf %6, %21 : vector<1x24x32xf32>
    %23 = vector.shape_cast %13 : vector<1x32xf32> to vector<1x1x32xf32>
    %cst_15 = arith.constant 0.000000e+00 : f32
    %24 = vector.shape_cast %23 : vector<1x1x32xf32> to vector<1x1x32xf32>
    %25 = vector.broadcast %24 : vector<1x1x32xf32> to vector<1x24x32xf32>
    %26 = vector.broadcast %cst_15 : f32 to vector<1x24x32xf32>
    %27 = arith.select %19, %25, %26 : vector<1x24x32xi1>, vector<1x24x32xf32>
    %28 = arith.addf %22, %27 : vector<1x24x32xf32>
    %c0_16 = arith.constant 0 : index
    %c0_17 = arith.constant 0 : index
    %29 = vector.load %arg3[%c0_16, %c0_17] : memref<24x32xf32, #tpu.memory_space<vmem>>, vector<24x32xf32>
    %30 = vector.shape_cast %29 : vector<24x32xf32> to vector<1x24x32xf32>
    %31 = arith.addf %7, %30 : vector<1x24x32xf32>
    %32 = vector.shape_cast %16 : vector<1x32xf32> to vector<1x1x32xf32>
    %cst_18 = arith.constant 0.000000e+00 : f32
    %33 = vector.shape_cast %32 : vector<1x1x32xf32> to vector<1x1x32xf32>
    %34 = vector.broadcast %33 : vector<1x1x32xf32> to vector<1x24x32xf32>
    %35 = vector.broadcast %cst_18 : f32 to vector<1x24x32xf32>
    %36 = arith.select %19, %34, %35 : vector<1x24x32xi1>, vector<1x24x32xf32>
    %37 = arith.addf %31, %36 : vector<1x24x32xf32>
    %c0_19 = arith.constant 0 : index
    %c0_20 = arith.constant 0 : index
    %c0_21 = arith.constant 0 : index
    %38 = vector.load %arg12[%c0_19, %c0_20, %c0_21] : memref<1x24x32xf32, #tpu.memory_space<vmem>>, vector<1x24x32xf32>
    tpu.vector_store %arg12[%c0_19, %c0_20, %c0_21], %28 {strides = array<i32>} : memref<1x24x32xf32, #tpu.memory_space<vmem>>, vector<1x24x32xf32>,
    %c0_22 = arith.constant 0 : index
    %c0_23 = arith.constant 0 : index
    %c0_24 = arith.constant 0 : index
    %39 = vector.load %arg13[%c0_22, %c0_23, %c0_24] : memref<1x24x32xf32, #tpu.memory_space<vmem>>, vector<1x24x32xf32>
    tpu.vector_store %arg13[%c0_22, %c0_23, %c0_24], %37 {strides = array<i32>} : memref<1x24x32xf32, #tpu.memory_space<vmem>>, vector<1x24x32xf32>,
    %c0_25 = arith.constant 0 : index
    %c0_26 = arith.constant 0 : index
    %40 = vector.load %arg5[%c0_25, %c0_26] : memref<32x32xf32, #tpu.memory_space<vmem>>, vector<32x32xf32>
    %cst_27 = arith.constant dense<0.000000e+00> : vector<1x32xf32>
    %41 = tpu.matmul %10, %40, %cst_27 {dimension_numbers = #tpu.dot_dimension_numbers<[1], [0], [0], [1], [0, 0, 1, 1], [], []>} : vector<1x32xf32>, vector<32x32xf32>, vector<1x32xf32> -> vector<1x32xf32>
    %42 = tpu.iota {dimensions = array<i32: 1>} : vector<1x16x32xi32>
    %c0_28 = arith.constant 0 : index
    %c0_29 = arith.constant 0 : index
    %43 = vector.load %arg4[%c0_28, %c0_29] : memref<16x32xf32, #tpu.memory_space<vmem>>, vector<16x32xf32>
    %44 = vector.shape_cast %43 : vector<16x32xf32> to vector<1x16x32xf32>
    %c0_i32 = arith.constant 0 : i32
    %45 = vector.broadcast %c0_i32 : i32 to vector<1x16x32xi32>
    %46 = arith.cmpi eq, %42, %45 : vector<1x16x32xi32>
    %47 = vector.shape_cast %41 : vector<1x32xf32> to vector<1x1x32xf32>
    %cst_30 = arith.constant 0.000000e+00 : f32
    %48 = vector.shape_cast %47 : vector<1x1x32xf32> to vector<1x1x32xf32>
    %49 = vector.broadcast %48 : vector<1x1x32xf32> to vector<1x16x32xf32>
    %50 = vector.broadcast %cst_30 : f32 to vector<1x16x32xf32>
    %51 = arith.select %46, %49, %50 : vector<1x16x32xi1>, vector<1x16x32xf32>
    %52 = arith.addf %44, %51 : vector<1x16x32xf32>
    %c0_31 = arith.constant 0 : index
    %c0_32 = arith.constant 0 : index
    %c0_33 = arith.constant 0 : index
    %53 = vector.load %arg11[%c0_31, %c0_32, %c0_33] : memref<1x16x32xf32, #tpu.memory_space<vmem>>, vector<1x16x32xf32>
    tpu.vector_store %arg11[%c0_31, %c0_32, %c0_33], %52 {strides = array<i32>} : memref<1x16x32xf32, #tpu.memory_space<vmem>>, vector<1x16x32xf32>,
    %54 = tpu.iota {dimensions = array<i32: 2>} : vector<1x16x24xi32>
    %c16_i32_34 = arith.constant 16 : i32
    %55 = vector.broadcast %c16_i32_34 : i32 to vector<1x16x24xi32>
    %56 = arith.cmpi sgt, %54, %55 : vector<1x16x24xi32>
    %cst_35 = arith.constant -1.000000e+30 : f32
    %cst_36 = arith.constant 0.000000e+00 : f32
    %57 = vector.broadcast %cst_35 : f32 to vector<1x16x24xf32>
    %58 = vector.broadcast %cst_36 : f32 to vector<1x16x24xf32>
    %59 = arith.select %56, %57, %58 : vector<1x16x24xi1>, vector<1x16x24xf32>
    %cst_37 = arith.constant 0.000000e+00 : f32
    %60 = vector.broadcast %cst_37 : f32 to vector<16x64xf32>
    %c0_38 = arith.constant 0 : index
    %c0_39 = arith.constant 0 : index
    %c0_40 = arith.constant 0 : index
    %61 = vector.load %arg11[%c0_38, %c0_39, %c0_40] : memref<1x16x32xf32, #tpu.memory_space<vmem>>, vector<1x16x8xf32>
    %c0_41 = arith.constant 0 : index
    %c0_42 = arith.constant 0 : index
    %c0_43 = arith.constant 0 : index
    %62 = vector.load %arg12[%c0_41, %c0_42, %c0_43] : memref<1x24x32xf32, #tpu.memory_space<vmem>>, vector<1x24x8xf32>
    %c0_44 = arith.constant 0 : index
    %c0_45 = arith.constant 0 : index
    %c0_46 = arith.constant 0 : index
    %63 = vector.load %arg13[%c0_44, %c0_45, %c0_46] : memref<1x24x32xf32, #tpu.memory_space<vmem>>, vector<1x24x8xf32>
    "tpu.trace_start"() <{level = 10 : i32, message = "bqd,bkd->bqk"}> : () -> ()
    %cst_47 = arith.constant dense<0.000000e+00> : vector<1x16x24xf32>
    %64 = tpu.matmul %61, %62, %cst_47 {dimension_numbers = #tpu.dot_dimension_numbers<[2], [2], [1], [1], [0, 0, 0, 1, 1, 1], [0], [0]>} : vector<1x16x8xf32>, vector<1x24x8xf32>, vector<1x16x24xf32> -> vector<1x16x24xf32>
    "tpu.trace_stop"() : () -> ()
    %65 = arith.addf %64, %59 : vector<1x16x24xf32>
    %cst_48 = arith.constant dense<0xFF800000> : vector<1x16xf32>
    %66 = vector.multi_reduction <maximumf>, %65, %cst_48 [2] : vector<1x16x24xf32> to vector<1x16xf32>
    %67 = vector.shape_cast %66 : vector<1x16xf32> to vector<1x16x1xf32>
    %68 = vector.broadcast %67 : vector<1x16x1xf32> to vector<1x16x24xf32>
    %69 = arith.subf %65, %68 : vector<1x16x24xf32>
    %70 = math.exp %69 : vector<1x16x24xf32>
    %cst_49 = arith.constant dense<0.000000e+00> : vector<1x16xf32>
    %71 = vector.multi_reduction <add>, %70, %cst_49 [2] : vector<1x16x24xf32> to vector<1x16xf32>
    %72 = vector.shape_cast %71 : vector<1x16xf32> to vector<1x16x1xf32>
    %73 = vector.broadcast %72 : vector<1x16x1xf32> to vector<1x16x24xf32>
    %74 = arith.divf %70, %73 : vector<1x16x24xf32>
    "tpu.trace_start"() <{level = 10 : i32, message = "bqk,bkd->bqd"}> : () -> ()
    %cst_50 = arith.constant dense<0.000000e+00> : vector<1x16x8xf32>
    %75 = tpu.matmul %74, %63, %cst_50 {dimension_numbers = #tpu.dot_dimension_numbers<[2], [1], [1], [2], [0, 0, 0, 1, 1, 2], [0], [0]>} : vector<1x16x24xf32>, vector<1x24x8xf32>, vector<1x16x8xf32> -> vector<1x16x8xf32>
    "tpu.trace_stop"() : () -> ()
    %76 = vector.shape_cast %75 : vector<1x16x8xf32> to vector<16x8xf32>
    %c0_51 = arith.constant 0 : index
    %c0_52 = arith.constant 0 : index
    %77 = vector.load %arg8[%c0_51, %c0_52] : memref<32x64xf32, #tpu.memory_space<vmem>>, vector<8x64xf32>
    %cst_53 = arith.constant dense<0.000000e+00> : vector<16x64xf32>
    %78 = tpu.matmul %76, %77, %cst_53 {dimension_numbers = #tpu.dot_dimension_numbers<[1], [0], [0], [1], [0, 0, 1, 1], [], []>} : vector<16x8xf32>, vector<8x64xf32>, vector<16x64xf32> -> vector<16x64xf32>
    %79 = arith.addf %60, %78 : vector<16x64xf32>
    %c0_54 = arith.constant 0 : index
    %c0_55 = arith.constant 0 : index
    %c8 = arith.constant 8 : index
    %80 = vector.load %arg11[%c0_54, %c0_55, %c8] : memref<1x16x32xf32, #tpu.memory_space<vmem>>, vector<1x16x8xf32>
    %c0_56 = arith.constant 0 : index
    %c0_57 = arith.constant 0 : index
    %c8_58 = arith.constant 8 : index
    %81 = vector.load %arg12[%c0_56, %c0_57, %c8_58] : memref<1x24x32xf32, #tpu.memory_space<vmem>>, vector<1x24x8xf32>
    %c0_59 = arith.constant 0 : index
    %c0_60 = arith.constant 0 : index
    %c8_61 = arith.constant 8 : index
    %82 = vector.load %arg13[%c0_59, %c0_60, %c8_61] : memref<1x24x32xf32, #tpu.memory_space<vmem>>, vector<1x24x8xf32>
    "tpu.trace_start"() <{level = 10 : i32, message = "bqd,bkd->bqk"}> : () -> ()
    %cst_62 = arith.constant dense<0.000000e+00> : vector<1x16x24xf32>
    %83 = tpu.matmul %80, %81, %cst_62 {dimension_numbers = #tpu.dot_dimension_numbers<[2], [2], [1], [1], [0, 0, 0, 1, 1, 1], [0], [0]>} : vector<1x16x8xf32>, vector<1x24x8xf32>, vector<1x16x24xf32> -> vector<1x16x24xf32>
    "tpu.trace_stop"() : () -> ()
    %84 = arith.addf %83, %59 : vector<1x16x24xf32>
    %cst_63 = arith.constant dense<0xFF800000> : vector<1x16xf32>
    %85 = vector.multi_reduction <maximumf>, %84, %cst_63 [2] : vector<1x16x24xf32> to vector<1x16xf32>
    %86 = vector.shape_cast %85 : vector<1x16xf32> to vector<1x16x1xf32>
    %87 = vector.broadcast %86 : vector<1x16x1xf32> to vector<1x16x24xf32>
    %88 = arith.subf %84, %87 : vector<1x16x24xf32>
    %89 = math.exp %88 : vector<1x16x24xf32>
    %cst_64 = arith.constant dense<0.000000e+00> : vector<1x16xf32>
    %90 = vector.multi_reduction <add>, %89, %cst_64 [2] : vector<1x16x24xf32> to vector<1x16xf32>
    %91 = vector.shape_cast %90 : vector<1x16xf32> to vector<1x16x1xf32>
    %92 = vector.broadcast %91 : vector<1x16x1xf32> to vector<1x16x24xf32>
    %93 = arith.divf %89, %92 : vector<1x16x24xf32>
    "tpu.trace_start"() <{level = 10 : i32, message = "bqk,bkd->bqd"}> : () -> ()
    %cst_65 = arith.constant dense<0.000000e+00> : vector<1x16x8xf32>
    %94 = tpu.matmul %93, %82, %cst_65 {dimension_numbers = #tpu.dot_dimension_numbers<[2], [1], [1], [2], [0, 0, 0, 1, 1, 2], [0], [0]>} : vector<1x16x24xf32>, vector<1x24x8xf32>, vector<1x16x8xf32> -> vector<1x16x8xf32>
    "tpu.trace_stop"() : () -> ()
    %95 = vector.shape_cast %94 : vector<1x16x8xf32> to vector<16x8xf32>
    %c8_66 = arith.constant 8 : index
    %c0_67 = arith.constant 0 : index
    %96 = vector.load %arg8[%c8_66, %c0_67] : memref<32x64xf32, #tpu.memory_space<vmem>>, vector<8x64xf32>
    %cst_68 = arith.constant dense<0.000000e+00> : vector<16x64xf32>
    %97 = tpu.matmul %95, %96, %cst_68 {dimension_numbers = #tpu.dot_dimension_numbers<[1], [0], [0], [1], [0, 0, 1, 1], [], []>} : vector<16x8xf32>, vector<8x64xf32>, vector<16x64xf32> -> vector<16x64xf32>
    %98 = arith.addf %79, %97 : vector<16x64xf32>
    %c0_69 = arith.constant 0 : index
    %c0_70 = arith.constant 0 : index
    %c16 = arith.constant 16 : index
    %99 = vector.load %arg11[%c0_69, %c0_70, %c16] : memref<1x16x32xf32, #tpu.memory_space<vmem>>, vector<1x16x8xf32>
    %c0_71 = arith.constant 0 : index
    %c0_72 = arith.constant 0 : index
    %c16_73 = arith.constant 16 : index
    %100 = vector.load %arg12[%c0_71, %c0_72, %c16_73] : memref<1x24x32xf32, #tpu.memory_space<vmem>>, vector<1x24x8xf32>
    %c0_74 = arith.constant 0 : index
    %c0_75 = arith.constant 0 : index
    %c16_76 = arith.constant 16 : index
    %101 = vector.load %arg13[%c0_74, %c0_75, %c16_76] : memref<1x24x32xf32, #tpu.memory_space<vmem>>, vector<1x24x8xf32>
    "tpu.trace_start"() <{level = 10 : i32, message = "bqd,bkd->bqk"}> : () -> ()
    %cst_77 = arith.constant dense<0.000000e+00> : vector<1x16x24xf32>
    %102 = tpu.matmul %99, %100, %cst_77 {dimension_numbers = #tpu.dot_dimension_numbers<[2], [2], [1], [1], [0, 0, 0, 1, 1, 1], [0], [0]>} : vector<1x16x8xf32>, vector<1x24x8xf32>, vector<1x16x24xf32> -> vector<1x16x24xf32>
    "tpu.trace_stop"() : () -> ()
    %103 = arith.addf %102, %59 : vector<1x16x24xf32>
    %cst_78 = arith.constant dense<0xFF800000> : vector<1x16xf32>
    %104 = vector.multi_reduction <maximumf>, %103, %cst_78 [2] : vector<1x16x24xf32> to vector<1x16xf32>
    %105 = vector.shape_cast %104 : vector<1x16xf32> to vector<1x16x1xf32>
    %106 = vector.broadcast %105 : vector<1x16x1xf32> to vector<1x16x24xf32>
    %107 = arith.subf %103, %106 : vector<1x16x24xf32>
    %108 = math.exp %107 : vector<1x16x24xf32>
    %cst_79 = arith.constant dense<0.000000e+00> : vector<1x16xf32>
    %109 = vector.multi_reduction <add>, %108, %cst_79 [2] : vector<1x16x24xf32> to vector<1x16xf32>
    %110 = vector.shape_cast %109 : vector<1x16xf32> to vector<1x16x1xf32>
    %111 = vector.broadcast %110 : vector<1x16x1xf32> to vector<1x16x24xf32>
    %112 = arith.divf %108, %111 : vector<1x16x24xf32>
    "tpu.trace_start"() <{level = 10 : i32, message = "bqk,bkd->bqd"}> : () -> ()
    %cst_80 = arith.constant dense<0.000000e+00> : vector<1x16x8xf32>
    %113 = tpu.matmul %112, %101, %cst_80 {dimension_numbers = #tpu.dot_dimension_numbers<[2], [1], [1], [2], [0, 0, 0, 1, 1, 2], [0], [0]>} : vector<1x16x24xf32>, vector<1x24x8xf32>, vector<1x16x8xf32> -> vector<1x16x8xf32>
    "tpu.trace_stop"() : () -> ()
    %114 = vector.shape_cast %113 : vector<1x16x8xf32> to vector<16x8xf32>
    %c16_81 = arith.constant 16 : index
    %c0_82 = arith.constant 0 : index
    %115 = vector.load %arg8[%c16_81, %c0_82] : memref<32x64xf32, #tpu.memory_space<vmem>>, vector<8x64xf32>
    %cst_83 = arith.constant dense<0.000000e+00> : vector<16x64xf32>
    %116 = tpu.matmul %114, %115, %cst_83 {dimension_numbers = #tpu.dot_dimension_numbers<[1], [0], [0], [1], [0, 0, 1, 1], [], []>} : vector<16x8xf32>, vector<8x64xf32>, vector<16x64xf32> -> vector<16x64xf32>
    %117 = arith.addf %98, %116 : vector<16x64xf32>
    %c0_84 = arith.constant 0 : index
    %c0_85 = arith.constant 0 : index
    %c24 = arith.constant 24 : index
    %118 = vector.load %arg11[%c0_84, %c0_85, %c24] : memref<1x16x32xf32, #tpu.memory_space<vmem>>, vector<1x16x8xf32>
    %c0_86 = arith.constant 0 : index
    %c0_87 = arith.constant 0 : index
    %c24_88 = arith.constant 24 : index
    %119 = vector.load %arg12[%c0_86, %c0_87, %c24_88] : memref<1x24x32xf32, #tpu.memory_space<vmem>>, vector<1x24x8xf32>
    %c0_89 = arith.constant 0 : index
    %c0_90 = arith.constant 0 : index
    %c24_91 = arith.constant 24 : index
    %120 = vector.load %arg13[%c0_89, %c0_90, %c24_91] : memref<1x24x32xf32, #tpu.memory_space<vmem>>, vector<1x24x8xf32>
    "tpu.trace_start"() <{level = 10 : i32, message = "bqd,bkd->bqk"}> : () -> ()
    %cst_92 = arith.constant dense<0.000000e+00> : vector<1x16x24xf32>
    %121 = tpu.matmul %118, %119, %cst_92 {dimension_numbers = #tpu.dot_dimension_numbers<[2], [2], [1], [1], [0, 0, 0, 1, 1, 1], [0], [0]>} : vector<1x16x8xf32>, vector<1x24x8xf32>, vector<1x16x24xf32> -> vector<1x16x24xf32>
    "tpu.trace_stop"() : () -> ()
    %122 = arith.addf %121, %59 : vector<1x16x24xf32>
    %cst_93 = arith.constant dense<0xFF800000> : vector<1x16xf32>
    %123 = vector.multi_reduction <maximumf>, %122, %cst_93 [2] : vector<1x16x24xf32> to vector<1x16xf32>
    %124 = vector.shape_cast %123 : vector<1x16xf32> to vector<1x16x1xf32>
    %125 = vector.broadcast %124 : vector<1x16x1xf32> to vector<1x16x24xf32>
    %126 = arith.subf %122, %125 : vector<1x16x24xf32>
    %127 = math.exp %126 : vector<1x16x24xf32>
    %cst_94 = arith.constant dense<0.000000e+00> : vector<1x16xf32>
    %128 = vector.multi_reduction <add>, %127, %cst_94 [2] : vector<1x16x24xf32> to vector<1x16xf32>
    %129 = vector.shape_cast %128 : vector<1x16xf32> to vector<1x16x1xf32>
    %130 = vector.broadcast %129 : vector<1x16x1xf32> to vector<1x16x24xf32>
    %131 = arith.divf %127, %130 : vector<1x16x24xf32>
    "tpu.trace_start"() <{level = 10 : i32, message = "bqk,bkd->bqd"}> : () -> ()
    %cst_95 = arith.constant dense<0.000000e+00> : vector<1x16x8xf32>
    %132 = tpu.matmul %131, %120, %cst_95 {dimension_numbers = #tpu.dot_dimension_numbers<[2], [1], [1], [2], [0, 0, 0, 1, 1, 2], [0], [0]>} : vector<1x16x24xf32>, vector<1x24x8xf32>, vector<1x16x8xf32> -> vector<1x16x8xf32>
    "tpu.trace_stop"() : () -> ()
    %133 = vector.shape_cast %132 : vector<1x16x8xf32> to vector<16x8xf32>
    %c24_96 = arith.constant 24 : index
    %c0_97 = arith.constant 0 : index
    %134 = vector.load %arg8[%c24_96, %c0_97] : memref<32x64xf32, #tpu.memory_space<vmem>>, vector<8x64xf32>
    %cst_98 = arith.constant dense<0.000000e+00> : vector<16x64xf32>
    %135 = tpu.matmul %133, %134, %cst_98 {dimension_numbers = #tpu.dot_dimension_numbers<[1], [0], [0], [1], [0, 0, 1, 1], [], []>} : vector<16x8xf32>, vector<8x64xf32>, vector<16x64xf32> -> vector<16x64xf32>
    %136 = arith.addf %117, %135 : vector<16x64xf32>
    %c0_99 = arith.constant 0 : index
    %c0_100 = arith.constant 0 : index
    %137 = vector.load %arg9[%c0_99, %c0_100] : memref<1x64xf32, #tpu.memory_space<vmem>>, vector<1x64xf32>
    %138 = vector.broadcast %137 : vector<1x64xf32> to vector<16x64xf32>
    %139 = arith.addf %136, %138 : vector<16x64xf32>
    %140 = vector.shape_cast %139 : vector<16x64xf32> to vector<1x16x64xf32>
    %c0_101 = arith.constant 0 : index
    %c0_102 = arith.constant 0 : index
    %c0_103 = arith.constant 0 : index
    %141 = vector.load %arg10[%c0_101, %c0_102, %c0_103] : memref<1x16x64xf32, #tpu.memory_space<vmem>>, vector<1x16x64xf32>
    tpu.vector_store %arg10[%c0_101, %c0_102, %c0_103], %140 {strides = array<i32>} : memref<1x16x64xf32, #tpu.memory_space<vmem>>, vector<1x16x64xf32>,
    return
  }
  func.func @transform_0(%arg0: i32) -> (i32, i32, i32) {
    %c0_i32 = arith.constant 0 : i32
    %c0_i32_0 = arith.constant 0 : i32
    %c0_i32_1 = arith.constant 0 : i32
    return %arg0, %c0_i32, %c0_i32_0 : i32, i32, i32
  }
  func.func @transform_1(%arg0: i32) -> (i32, i32) {
    %c0_i32 = arith.constant 0 : i32
    %c0_i32_0 = arith.constant 0 : i32
    %c0_i32_1 = arith.constant 0 : i32
    return %c0_i32, %c0_i32_0 : i32, i32
  }
  func.func @transform_2(%arg0: i32) -> (i32, i32) {
    %c0_i32 = arith.constant 0 : i32
    %c0_i32_0 = arith.constant 0 : i32
    %c0_i32_1 = arith.constant 0 : i32
    return %c0_i32, %c0_i32_0 : i32, i32
  }
  func.func @transform_3(%arg0: i32) -> (i32, i32) {
    %c0_i32 = arith.constant 0 : i32
    %c0_i32_0 = arith.constant 0 : i32
    %c0_i32_1 = arith.constant 0 : i32
    return %c0_i32, %c0_i32_0 : i32, i32
  }
  func.func @transform_4(%arg0: i32) -> (i32, i32) {
    %c0_i32 = arith.constant 0 : i32
    %c0_i32_0 = arith.constant 0 : i32
    %c0_i32_1 = arith.constant 0 : i32
    return %c0_i32, %c0_i32_0 : i32, i32
  }
  func.func @transform_5(%arg0: i32) -> (i32, i32) {
    %c0_i32 = arith.constant 0 : i32
    %c0_i32_0 = arith.constant 0 : i32
    %c0_i32_1 = arith.constant 0 : i32
    return %c0_i32, %c0_i32_0 : i32, i32
  }
  func.func @transform_6(%arg0: i32) -> (i32, i32) {
    %c0_i32 = arith.constant 0 : i32
    %c0_i32_0 = arith.constant 0 : i32
    %c0_i32_1 = arith.constant 0 : i32
    return %c0_i32, %c0_i32_0 : i32, i32
  }
  func.func @transform_7(%arg0: i32) -> (i32, i32) {
    %c0_i32 = arith.constant 0 : i32
    %c0_i32_0 = arith.constant 0 : i32
    %c0_i32_1 = arith.constant 0 : i32
    return %c0_i32, %c0_i32_0 : i32, i32
  }
  func.func @transform_8(%arg0: i32) -> (i32, i32) {
    %c0_i32 = arith.constant 0 : i32
    %c0_i32_0 = arith.constant 0 : i32
    %c0_i32_1 = arith.constant 0 : i32
    return %c0_i32, %c0_i32_0 : i32, i32
  }
  func.func @transform_9(%arg0: i32) -> (i32, i32, i32) {
    %c0_i32 = arith.constant 0 : i32
    %c0_i32_0 = arith.constant 0 : i32
    %c0_i32_1 = arith.constant 0 : i32
    return %arg0, %c0_i32, %c0_i32_0 : i32, i32, i32
  }
}

</mosaic_0001>

<llo_original>
// kernel: tpu_custom_call.1
$region0: #{tpu_custom_call.1}
  #allocation0 [shape = 'u32[]', space=smem, size = 0x4, offset = 0x4, fixed_abs, tag = 'smem constant byte address 0x4 - core index']
  #allocation1 [shape = 'u32[72,128]{1,0:T(1,128)}', space=vmem, size = 0x9000, scoped, tag = 'internal scratch']
  #allocation2 [shape = 'f32[1,16,32]{2,1,0:T(8,128)}', space=vmem, size = 0x2000, scoped, tag = 'scratch operand']
  #allocation3 [shape = 'f32[1,24,32]{2,1,0:T(8,128)}', space=vmem, size = 0x3000, scoped, tag = 'scratch operand']
  #allocation4 [shape = 'f32[1,24,32]{2,1,0:T(8,128)}', space=vmem, size = 0x3000, scoped, tag = 'scratch operand']
  %s0 = inlined_call_operand.hbm [shape: f32[2,24,32], index: 0, kind: input, shape index: {}]
  %s1 = inlined_call_operand.hbm [shape: f32[24,32], index: 1, kind: input, shape index: {}]
  %s2 = inlined_call_operand.hbm [shape: f32[24,32], index: 2, kind: input, shape index: {}]
  %s3 = inlined_call_operand.hbm [shape: f32[16,32], index: 3, kind: input, shape index: {}]
  %s4 = inlined_call_operand.hbm [shape: f32[32,32], index: 4, kind: input, shape index: {}]
  %s5 = inlined_call_operand.hbm [shape: f32[32,32], index: 5, kind: input, shape index: {}]
  %s6 = inlined_call_operand.hbm [shape: f32[32,32], index: 6, kind: input, shape index: {}]
  %s7 = inlined_call_operand.hbm [shape: f32[32,64], index: 7, kind: input, shape index: {}]
  %s8 = inlined_call_operand.vmem [shape: f32[1,64], index: 8, kind: input, shape index: {}]
  %s9 = inlined_call_operand.hbm [shape: f32[2,16,64], index: 9, kind: output, shape index: {}]
  %s10 = sld [smem:[#allocation0]]
  $region101: #{tpu_custom_call.1} parent=0
    _
  %s12 = ssub.s32 1, %s10
  %s13 = scalar_select 0, %s12, %s10
  $region1: #{tpu_custom_call.1} parent=0
    #allocation5 [shape = 'u8[24576]{0}', space=vmem, size = 0x6000, scoped, tag = 'input window, operand 0']
    #allocation6 [shape = 's32[2]{0}', space=sflag, size = 0x8, scoped, tag = 'scoped memory for tpu_custom_call.1']
    #allocation7 [shape = 's32[2]{0}', space=sflag, size = 0x8, scoped, tag = 'scoped memory for tpu_custom_call.1']
    #allocation8 [shape = 'u8[12288]{0}', space=vmem, size = 0x3000, scoped, tag = 'input window, operand 1, single buffered']
    #allocation9 [shape = 's32[1]{0}', space=sflag, size = 0x4, scoped, tag = 'scoped memory for tpu_custom_call.1']
    #allocation10 [shape = 'u8[12288]{0}', space=vmem, size = 0x3000, scoped, tag = 'input window, operand 2, single buffered']
    #allocation11 [shape = 'u8[8192]{0}', space=vmem, size = 0x2000, scoped, tag = 'input window, operand 3, single buffered']
    #allocation12 [shape = 's32[1]{0}', space=sflag, size = 0x4, scoped, tag = 'scoped memory for tpu_custom_call.1']
    #allocation13 [shape = 'u8[16384]{0}', space=vmem, size = 0x4000, scoped, tag = 'input window, operand 4, single buffered']
    #allocation14 [shape = 'u8[16384]{0}', space=vmem, size = 0x4000, scoped, tag = 'input window, operand 5, single buffered']
    #allocation15 [shape = 's32[1]{0}', space=sflag, size = 0x4, scoped, tag = 'scoped memory for tpu_custom_call.1']
    #allocation16 [shape = 'u8[16384]{0}', space=vmem, size = 0x4000, scoped, tag = 'input window, operand 6, single buffered']
    #allocation17 [shape = 'u8[16384]{0}', space=vmem, size = 0x4000, scoped, tag = 'input window, operand 7, single buffered']
    #allocation18 [shape = 's32[1]{0}', space=sflag, size = 0x4, scoped, tag = 'scoped memory for tpu_custom_call.1']
    #allocation19 [shape = 'u8[16384]{0}', space=vmem, size = 0x4000, scoped, tag = 'output window, operand 0']
    %14 = vsyncpa [#allocation6], 0
    %s15 = scalar_lea.sflag [#allocation6], 1
    %16 = vsyncpa %s15, 0
    %17 = vsyncpa [#allocation9], 0
    %18 = vsyncpa [#allocation12], 0
    %19 = vsyncpa [#allocation15], 0
    %20 = vsyncpa [#allocation18], 0
    %21 = vsyncpa [#allocation7], 0
    %s22 = scalar_lea.sflag [#allocation7], 1
    %23 = vsyncpa %s22, 0
    loop: start=0, step=1, limit=4
    $region2: #{tpu_custom_call.1} parent=1 // loop_pre_header
      _
    $region3: #{tpu_custom_call.1} parent=1 // loop_header
      %s25 = sphi 0, %s29
      %p26 = scmp.ge.s32.totalorder %s25, 4
      %s35 = sphi 0, %s37
      %s38 = sphi 0, %s35
      %s39 = sphi 0, %s38
      %s55 = sphi 0, %s39
      %s59 = sphi 0, %s59
      %s61 = sphi 0, %s59
      %s62 = sphi 0, %s61
      %s76 = sphi 0, %s62
      %s80 = sphi 0, %s80
      %s82 = sphi 0, %s80
      %s83 = sphi 0, %s82
      %s97 = sphi 0, %s83
      %s101 = sphi 0, %s101
      %s103 = sphi 0, %s101
      %s104 = sphi 0, %s103
      %s118 = sphi 0, %s104
      %s122 = sphi 0, %s122
      %s124 = sphi 0, %s122
      %s125 = sphi 0, %s124
      %s139 = sphi 0, %s125
      %s143 = sphi 0, %s143
      %s145 = sphi 0, %s143
      %s146 = sphi 0, %s145
      %s160 = sphi 0, %s146
      %s164 = sphi 0, %s164
      %s166 = sphi 0, %s164
      %s167 = sphi 0, %s166
      %s181 = sphi 0, %s167
      %s185 = sphi 0, %s185
      %s187 = sphi 0, %s185
      %s188 = sphi 0, %s187
      %s202 = sphi 0, %s188
      %s206 = sphi 0, %s206
      %s208 = sphi 0, %s206
      %s209 = sphi 0, %s208
      %s223 = sphi 0, %s209
      %s229 = sphi 0, %s231
      %s232 = sphi 0, %s229
      %s233 = sphi 0, %s232
      %s249 = sphi 0, %s233
    $region4: #{tpu_custom_call.1} parent=1 // loop_header_branch
      %28 = sbr.rel (%p26) target = $region8
    $region5: #{tpu_custom_call.1} parent=1 // loop_body
      %s30 = ssub.s32 %s25, 1
      %s31 = ssub.s32 %s25, 2
      %s32 = sadd.s32 %s25, 1
      %s33 = ssub.s32 %s25, %s32
      %p34 = scmp.eq.s32.totalorder %s33, 0
      %s36 = sadd.s32 %s35, 1
      %s37 = scalar_select %p34, %s35, %s36
      %p40 = pneg %p34
      %p41 = scmp.eq.s32.totalorder %s25, 1
      %p42 = por %p40, %p41
      %p43 = scmp.ne.s32.totalorder %s35, %s38
      %p44 = scmp.eq.s32.totalorder %s25, 0
      %p45 = por %p43, %p44
      %p46 = scmp.ne.s32.totalorder %s35, %s38
      %p47 = scmp.eq.s32.totalorder %s30, 1
      %p48 = por %p46, %p47
      %p49 = scmp.ne.s32.totalorder %s38, %s39
      %p50 = scmp.eq.s32.totalorder %s30, 0
      %p51 = por %p49, %p50
      %p52 = scmp.ne.s32.totalorder %s38, %s39
      %p53 = scmp.eq.s32.totalorder %s31, 1
      %p54 = por %p52, %p53
      %p56 = scmp.ne.s32.totalorder %s39, %s55
      %p57 = scmp.eq.s32.totalorder %s31, 0
      %p58 = por %p56, %p57
      %s60 = sadd.s32 %s59, 1
      %p63 = scmp.eq.s32.totalorder %s25, 1
      %p64 = scmp.ne.s32.totalorder %s59, %s61
      %p65 = scmp.eq.s32.totalorder %s25, 0
      %p66 = por %p64, %p65
      %p67 = scmp.ne.s32.totalorder %s59, %s61
      %p68 = scmp.eq.s32.totalorder %s30, 1
      %p69 = por %p67, %p68
      %p70 = scmp.ne.s32.totalorder %s61, %s62
      %p71 = scmp.eq.s32.totalorder %s30, 0
      %p72 = por %p70, %p71
      %p73 = scmp.ne.s32.totalorder %s61, %s62
      %p74 = scmp.eq.s32.totalorder %s31, 1
      %p75 = por %p73, %p74
      %p77 = scmp.ne.s32.totalorder %s62, %s76
      %p78 = scmp.eq.s32.totalorder %s31, 0
      %p79 = por %p77, %p78
      %s81 = sadd.s32 %s80, 1
      %p84 = scmp.eq.s32.totalorder %s25, 1
      %p85 = scmp.ne.s32.totalorder %s80, %s82
      %p86 = scmp.eq.s32.totalorder %s25, 0
      %p87 = por %p85, %p86
      %p88 = scmp.ne.s32.totalorder %s80, %s82
      %p89 = scmp.eq.s32.totalorder %s30, 1
      %p90 = por %p88, %p89
      %p91 = scmp.ne.s32.totalorder %s82, %s83
      %p92 = scmp.eq.s32.totalorder %s30, 0
      %p93 = por %p91, %p92
      %p94 = scmp.ne.s32.totalorder %s82, %s83
      %p95 = scmp.eq.s32.totalorder %s31, 1
      %p96 = por %p94, %p95
      %p98 = scmp.ne.s32.totalorder %s83, %s97
      %p99 = scmp.eq.s32.totalorder %s31, 0
      %p100 = por %p98, %p99
      %s102 = sadd.s32 %s101, 1
      %p105 = scmp.eq.s32.totalorder %s25, 1
      %p106 = scmp.ne.s32.totalorder %s101, %s103
      %p107 = scmp.eq.s32.totalorder %s25, 0
      %p108 = por %p106, %p107
      %p109 = scmp.ne.s32.totalorder %s101, %s103
      %p110 = scmp.eq.s32.totalorder %s30, 1
      %p111 = por %p109, %p110
      %p112 = scmp.ne.s32.totalorder %s103, %s104
      %p113 = scmp.eq.s32.totalorder %s30, 0
      %p114 = por %p112, %p113
      %p115 = scmp.ne.s32.totalorder %s103, %s104
      %p116 = scmp.eq.s32.totalorder %s31, 1
      %p117 = por %p115, %p116
      %p119 = scmp.ne.s32.totalorder %s104, %s118
      %p120 = scmp.eq.s32.totalorder %s31, 0
      %p121 = por %p119, %p120
      %s123 = sadd.s32 %s122, 1
      %p126 = scmp.eq.s32.totalorder %s25, 1
      %p127 = scmp.ne.s32.totalorder %s122, %s124
      %p128 = scmp.eq.s32.totalorder %s25, 0
      %p129 = por %p127, %p128
      %p130 = scmp.ne.s32.totalorder %s122, %s124
      %p131 = scmp.eq.s32.totalorder %s30, 1
      %p132 = por %p130, %p131
      %p133 = scmp.ne.s32.totalorder %s124, %s125
      %p134 = scmp.eq.s32.totalorder %s30, 0
      %p135 = por %p133, %p134
      %p136 = scmp.ne.s32.totalorder %s124, %s125
      %p137 = scmp.eq.s32.totalorder %s31, 1
      %p138 = por %p136, %p137
      %p140 = scmp.ne.s32.totalorder %s125, %s139
      %p141 = scmp.eq.s32.totalorder %s31, 0
      %p142 = por %p140, %p141
      %s144 = sadd.s32 %s143, 1
      %p147 = scmp.eq.s32.totalorder %s25, 1
      %p148 = scmp.ne.s32.totalorder %s143, %s145
      %p149 = scmp.eq.s32.totalorder %s25, 0
      %p150 = por %p148, %p149
      %p151 = scmp.ne.s32.totalorder %s143, %s145
      %p152 = scmp.eq.s32.totalorder %s30, 1
      %p153 = por %p151, %p152
      %p154 = scmp.ne.s32.totalorder %s145, %s146
      %p155 = scmp.eq.s32.totalorder %s30, 0
      %p156 = por %p154, %p155
      %p157 = scmp.ne.s32.totalorder %s145, %s146
      %p158 = scmp.eq.s32.totalorder %s31, 1
      %p159 = por %p157, %p158
      %p161 = scmp.ne.s32.totalorder %s146, %s160
      %p162 = scmp.eq.s32.totalorder %s31, 0
      %p163 = por %p161, %p162
      %s165 = sadd.s32 %s164, 1
      %p168 = scmp.eq.s32.totalorder %s25, 1
      %p169 = scmp.ne.s32.totalorder %s164, %s166
      %p170 = scmp.eq.s32.totalorder %s25, 0
      %p171 = por %p169, %p170
      %p172 = scmp.ne.s32.totalorder %s164, %s166
      %p173 = scmp.eq.s32.totalorder %s30, 1
      %p174 = por %p172, %p173
      %p175 = scmp.ne.s32.totalorder %s166, %s167
      %p176 = scmp.eq.s32.totalorder %s30, 0
      %p177 = por %p175, %p176
      %p178 = scmp.ne.s32.totalorder %s166, %s167
      %p179 = scmp.eq.s32.totalorder %s31, 1
      %p180 = por %p178, %p179
      %p182 = scmp.ne.s32.totalorder %s167, %s181
      %p183 = scmp.eq.s32.totalorder %s31, 0
      %p184 = por %p182, %p183
      %s186 = sadd.s32 %s185, 1
      %p189 = scmp.eq.s32.totalorder %s25, 1
      %p190 = scmp.ne.s32.totalorder %s185, %s187
      %p191 = scmp.eq.s32.totalorder %s25, 0
      %p192 = por %p190, %p191
      %p193 = scmp.ne.s32.totalorder %s185, %s187
      %p194 = scmp.eq.s32.totalorder %s30, 1
      %p195 = por %p193, %p194
      %p196 = scmp.ne.s32.totalorder %s187, %s188
      %p197 = scmp.eq.s32.totalorder %s30, 0
      %p198 = por %p196, %p197
      %p199 = scmp.ne.s32.totalorder %s187, %s188
      %p200 = scmp.eq.s32.totalorder %s31, 1
      %p201 = por %p199, %p200
      %p203 = scmp.ne.s32.totalorder %s188, %s202
      %p204 = scmp.eq.s32.totalorder %s31, 0
      %p205 = por %p203, %p204
      %s207 = sadd.s32 %s206, 1
      %p210 = scmp.eq.s32.totalorder %s25, 1
      %p211 = scmp.ne.s32.totalorder %s206, %s208
      %p212 = scmp.eq.s32.totalorder %s25, 0
      %p213 = por %p211, %p212
      %p214 = scmp.ne.s32.totalorder %s206, %s208
      %p215 = scmp.eq.s32.totalorder %s30, 1
      %p216 = por %p214, %p215
      %p217 = scmp.ne.s32.totalorder %s208, %s209
      %p218 = scmp.eq.s32.totalorder %s30, 0
      %p219 = por %p217, %p218
      %p220 = scmp.ne.s32.totalorder %s208, %s209
      %p221 = scmp.eq.s32.totalorder %s31, 1
      %p222 = por %p220, %p221
      %p224 = scmp.ne.s32.totalorder %s209, %s223
      %p225 = scmp.eq.s32.totalorder %s31, 0
      %p226 = por %p224, %p225
      %s227 = ssub.s32 %s25, %s32
      %p228 = scmp.eq.s32.totalorder %s227, 0
      %s230 = sadd.s32 %s229, 1
      %s231 = scalar_select %p228, %s229, %s230
      %p234 = pneg %p228
      %p235 = scmp.eq.s32.totalorder %s25, 1
      %p236 = por %p234, %p235
      %p237 = scmp.ne.s32.totalorder %s229, %s232
      %p238 = scmp.eq.s32.totalorder %s25, 0
      %p239 = por %p237, %p238
      %p240 = scmp.ne.s32.totalorder %s229, %s232
      %p241 = scmp.eq.s32.totalorder %s30, 1
      %p242 = por %p240, %p241
      %p243 = scmp.ne.s32.totalorder %s232, %s233
      %p244 = scmp.eq.s32.totalorder %s30, 0
      %p245 = por %p243, %p244
      %p246 = scmp.ne.s32.totalorder %s232, %s233
      %p247 = scmp.eq.s32.totalorder %s31, 1
      %p248 = por %p246, %p247
      %p250 = scmp.ne.s32.totalorder %s233, %s249
      %p251 = scmp.eq.s32.totalorder %s31, 0
      %p252 = por %p250, %p251
      %p253 = scmp.le.s32.totalorder 1, %s25
      %p254 = scmp.lt.s32.totalorder %s25, 3
      %p255 = pnand %p253, %p254
      %p256 = pneg %p255
      // Predicated region
      $region9: #{tpu_custom_call.1} parent=5 // pred_check
        _
      $region10: #{tpu_custom_call.1} parent=5 // pred_check_branch
        %258 = sbr.rel (%p255) target = $region12
      $region11: #{tpu_custom_call.1} parent=5 // pred_region
        %s259 = ssub.s32 %s25, 1
        // Predicated region
        $region13: #{tpu_custom_call.1} parent=11 // pred_check
          %p260 = pneg %p72
        $region14: #{tpu_custom_call.1} parent=11 // pred_check_branch
          %262 = sbr.rel (%p260) target = $region16
        $region15: #{tpu_custom_call.1} parent=11 // pred_region
          %264 = vsyncadd [#allocation9], 0
          %s265 = sshll.u32 %s1, 4
          %s266 = int_to_ptr.hbm [resolvable:$true] %s265
          %s267 = sshll.u32 [#allocation8], 4
          %s268 = int_to_ptr.vmem [resolvable:$true] %s267
          %273 = dma.hbm_to_vmem [thread:$0]  %s266, 384, %s268, [#allocation9], 128, 128, 8
        $region16: #{tpu_custom_call.1} parent=11 // pred_fallthru
          _
        // Predicated region
        $region17: #{tpu_custom_call.1} parent=11 // pred_check
          %p274 = pneg %p93
        $region18: #{tpu_custom_call.1} parent=11 // pred_check_branch
          %276 = sbr.rel (%p274) target = $region20
        $region19: #{tpu_custom_call.1} parent=11 // pred_region
          %278 = vsyncadd [#allocation9], 0
          %s279 = sshll.u32 %s2, 4
          %s280 = int_to_ptr.hbm [resolvable:$true] %s279
          %s281 = sshll.u32 [#allocation10], 4
          %s282 = int_to_ptr.vmem [resolvable:$true] %s281
          %287 = dma.hbm_to_vmem [thread:$0]  %s280, 384, %s282, [#allocation9], 128, 128, 8
        $region20: #{tpu_custom_call.1} parent=11 // pred_fallthru
          _
        // Predicated region
        $region21: #{tpu_custom_call.1} parent=11 // pred_check
          %p288 = pneg %p114
        $region22: #{tpu_custom_call.1} parent=11 // pred_check_branch
          %290 = sbr.rel (%p288) target = $region24
        $region23: #{tpu_custom_call.1} parent=11 // pred_region
          %292 = vsyncadd [#allocation12], 0
          %s293 = sshll.u32 %s3, 4
          %s294 = int_to_ptr.hbm [resolvable:$true] %s293
          %s295 = sshll.u32 [#allocation11], 4
          %s296 = int_to_ptr.vmem [resolvable:$true] %s295
          %301 = dma.hbm_to_vmem [thread:$0]  %s294, 256, %s296, [#allocation12], 128, 128, 8
        $region24: #{tpu_custom_call.1} parent=11 // pred_fallthru
          _
        // Predicated region
        $region25: #{tpu_custom_call.1} parent=11 // pred_check
          %p302 = pneg %p135
        $region26: #{tpu_custom_call.1} parent=11 // pred_check_branch
          %304 = sbr.rel (%p302) target = $region28
        $region27: #{tpu_custom_call.1} parent=11 // pred_region
          %306 = vsyncadd [#allocation12], 0
          %s307 = sshll.u32 %s4, 4
          %s308 = int_to_ptr.hbm [resolvable:$true] %s307
          %s309 = sshll.u32 [#allocation13], 4
          %s310 = int_to_ptr.vmem [resolvable:$true] %s309
          %315 = dma.hbm_to_vmem [thread:$0]  %s308, 512, %s310, [#allocation12], 128, 128, 8
        $region28: #{tpu_custom_call.1} parent=11 // pred_fallthru
          _
        // Predicated region
        $region29: #{tpu_custom_call.1} parent=11 // pred_check
          %p316 = pneg %p156
        $region30: #{tpu_custom_call.1} parent=11 // pred_check_branch
          %318 = sbr.rel (%p316) target = $region32
        $region31: #{tpu_custom_call.1} parent=11 // pred_region
          %320 = vsyncadd [#allocation15], 0
          %s321 = sshll.u32 %s5, 4
          %s322 = int_to_ptr.hbm [resolvable:$true] %s321
          %s323 = sshll.u32 [#allocation14], 4
          %s324 = int_to_ptr.vmem [resolvable:$true] %s323
          %329 = dma.hbm_to_vmem [thread:$0]  %s322, 512, %s324, [#allocation15], 128, 128, 8
        $region32: #{tpu_custom_call.1} parent=11 // pred_fallthru
          _
        // Predicated region
        $region33: #{tpu_custom_call.1} parent=11 // pred_check
          %p330 = pneg %p177
        $region34: #{tpu_custom_call.1} parent=11 // pred_check_branch
          %332 = sbr.rel (%p330) target = $region36
        $region35: #{tpu_custom_call.1} parent=11 // pred_region
          %334 = vsyncadd [#allocation15], 0
          %s335 = sshll.u32 %s6, 4
          %s336 = int_to_ptr.hbm [resolvable:$true] %s335
          %s337 = sshll.u32 [#allocation16], 4
          %s338 = int_to_ptr.vmem [resolvable:$true] %s337
          %343 = dma.hbm_to_vmem [thread:$0]  %s336, 512, %s338, [#allocation15], 128, 128, 8
        $region36: #{tpu_custom_call.1} parent=11 // pred_fallthru
          _
        // Predicated region
        $region37: #{tpu_custom_call.1} parent=11 // pred_check
          %p344 = pneg %p198
        $region38: #{tpu_custom_call.1} parent=11 // pred_check_branch
          %346 = sbr.rel (%p344) target = $region40
        $region39: #{tpu_custom_call.1} parent=11 // pred_region
          %348 = vsyncadd [#allocation18], 0
          %s349 = sshll.u32 %s7, 4
          %s350 = int_to_ptr.hbm [resolvable:$true] %s349
          %s351 = sshll.u32 [#allocation17], 4
          %s352 = int_to_ptr.vmem [resolvable:$true] %s351
          %357 = dma.hbm_to_vmem [thread:$0]  %s350, 512, %s352, [#allocation18], 128, 128, 8
        $region40: #{tpu_custom_call.1} parent=11 // pred_fallthru
          _
        // Predicated region
        $region41: #{tpu_custom_call.1} parent=11 // pred_check
          %p358 = pneg %p219
        $region42: #{tpu_custom_call.1} parent=11 // pred_check_branch
          %360 = sbr.rel (%p358) target = $region44
        $region43: #{tpu_custom_call.1} parent=11 // pred_region
          _
        $region44: #{tpu_custom_call.1} parent=11 // pred_fallthru
          _
      $region12: #{tpu_custom_call.1} parent=5 // pred_fallthru
        _
      %p361 = scmp.lt.s32.totalorder %s25, 2
      // Predicated region
      $region45: #{tpu_custom_call.1} parent=5 // pred_check
        %p362 = pneg %p361
      $region46: #{tpu_custom_call.1} parent=5 // pred_check_branch
        %364 = sbr.rel (%p362) target = $region48
      $region47: #{tpu_custom_call.1} parent=5 // pred_region
        // Predicated region
        $region49: #{tpu_custom_call.1} parent=47 // pred_check
          %p365 = pneg %p45
        $region50: #{tpu_custom_call.1} parent=47 // pred_check_branch
          %367 = sbr.rel (%p365) target = $region52
        $region51: #{tpu_custom_call.1} parent=47 // pred_region
          %s368 = sand.u32 %s35, 1
          %s369 = scalar_lea.sflag [#allocation6], %s368
          %s370 = sand.u32 %s35, 1
          %s371 = smul.addr %s370, 24
          %s372 = scalar_lea.vmem [#allocation5], %s371
          %374 = vsyncadd %s369, 0
          %s375 = smul.addr %s25, 3
          %s376 = smul.addr %s375, 8
          %s377 = scalar_lea.hbm %s0, %s376
          %s378 = sshll.u32 %s377, 4
          %s379 = int_to_ptr.hbm [resolvable:$true] %s378
          %s380 = sshll.u32 %s372, 4
          %s381 = int_to_ptr.vmem [resolvable:$true] %s380
          %386 = dma.hbm_to_vmem [thread:$0]  %s379, 384, %s381, %s369, 128, 128, 8
        $region52: #{tpu_custom_call.1} parent=47 // pred_fallthru
          _
      $region48: #{tpu_custom_call.1} parent=5 // pred_fallthru
        _
      %p387 = scmp.le.s32.totalorder 1, %s25
      %p388 = scmp.lt.s32.totalorder %s25, 3
      %p389 = pnand %p387, %p388
      %p390 = pneg %p389
      // Predicated region
      $region53: #{tpu_custom_call.1} parent=5 // pred_check
        _
      $region54: #{tpu_custom_call.1} parent=5 // pred_check_branch
        %392 = sbr.rel (%p389) target = $region56
      $region55: #{tpu_custom_call.1} parent=5 // pred_region
        %s393 = ssub.s32 %s25, 1
        %s394 = sand.u32 %s38, 1
        %s395 = scalar_lea.sflag [#allocation6], %s394
        %s396 = sand.u32 %s38, 1
        %s397 = smul.addr %s396, 24
        %s398 = scalar_lea.vmem [#allocation5], %s397
        // Predicated region
        $region57: #{tpu_custom_call.1} parent=55 // pred_check
          %p399 = pneg %p51
        $region58: #{tpu_custom_call.1} parent=55 // pred_check_branch
          %401 = sbr.rel (%p399) target = $region60
        $region59: #{tpu_custom_call.1} parent=55 // pred_region
          %403 = dma.done %s395, 384
        $region60: #{tpu_custom_call.1} parent=55 // pred_fallthru
          _
        // Predicated region
        $region61: #{tpu_custom_call.1} parent=55 // pred_check
          %p404 = pneg %p72
        $region62: #{tpu_custom_call.1} parent=55 // pred_check_branch
          %406 = sbr.rel (%p404) target = $region64
        $region63: #{tpu_custom_call.1} parent=55 // pred_region
          %408 = dma.done [#allocation9], 384
        $region64: #{tpu_custom_call.1} parent=55 // pred_fallthru
          _
        // Predicated region
        $region65: #{tpu_custom_call.1} parent=55 // pred_check
          %p409 = pneg %p93
        $region66: #{tpu_custom_call.1} parent=55 // pred_check_branch
          %411 = sbr.rel (%p409) target = $region68
        $region67: #{tpu_custom_call.1} parent=55 // pred_region
          %413 = dma.done [#allocation9], 384
        $region68: #{tpu_custom_call.1} parent=55 // pred_fallthru
          _
        // Predicated region
        $region69: #{tpu_custom_call.1} parent=55 // pred_check
          %p414 = pneg %p114
        $region70: #{tpu_custom_call.1} parent=55 // pred_check_branch
          %416 = sbr.rel (%p414) target = $region72
        $region71: #{tpu_custom_call.1} parent=55 // pred_region
          %418 = dma.done [#allocation12], 256
        $region72: #{tpu_custom_call.1} parent=55 // pred_fallthru
          _
        // Predicated region
        $region73: #{tpu_custom_call.1} parent=55 // pred_check
          %p419 = pneg %p135
        $region74: #{tpu_custom_call.1} parent=55 // pred_check_branch
          %421 = sbr.rel (%p419) target = $region76
        $region75: #{tpu_custom_call.1} parent=55 // pred_region
          %423 = dma.done [#allocation12], 512
        $region76: #{tpu_custom_call.1} parent=55 // pred_fallthru
          _
        // Predicated region
        $region77: #{tpu_custom_call.1} parent=55 // pred_check
          %p424 = pneg %p156
        $region78: #{tpu_custom_call.1} parent=55 // pred_check_branch
          %426 = sbr.rel (%p424) target = $region80
        $region79: #{tpu_custom_call.1} parent=55 // pred_region
          %428 = dma.done [#allocation15], 512
        $region80: #{tpu_custom_call.1} parent=55 // pred_fallthru
          _
        // Predicated region
        $region81: #{tpu_custom_call.1} parent=55 // pred_check
          %p429 = pneg %p177
        $region82: #{tpu_custom_call.1} parent=55 // pred_check_branch
          %431 = sbr.rel (%p429) target = $region84
        $region83: #{tpu_custom_call.1} parent=55 // pred_region
          %433 = dma.done [#allocation15], 512
        $region84: #{tpu_custom_call.1} parent=55 // pred_fallthru
          _
        // Predicated region
        $region85: #{tpu_custom_call.1} parent=55 // pred_check
          %p434 = pneg %p198
        $region86: #{tpu_custom_call.1} parent=55 // pred_check_branch
          %436 = sbr.rel (%p434) target = $region88
        $region87: #{tpu_custom_call.1} parent=55 // pred_region
          %438 = dma.done [#allocation18], 512
        $region88: #{tpu_custom_call.1} parent=55 // pred_fallthru
          _
        %s439 = sand.u32 %s38, 1
        %s440 = scalar_lea.sflag [#allocation6], %s439
        %s441 = sand.u32 %s38, 1
        %s442 = smul.addr %s441, 24
        %s443 = scalar_lea.vmem [#allocation5], %s442
        %p444 = pneg %p51
        %p445 = pneg %p48
        %p446 = pneg %p72
        %p447 = pneg %p69
        %p448 = pneg %p93
        %p449 = pneg %p90
        %p450 = pneg %p114
        %p451 = pneg %p111
        %p452 = pneg %p135
        %p453 = pneg %p132
        %p454 = pneg %p156
        %p455 = pneg %p153
        %p456 = pneg %p177
        %p457 = pneg %p174
        %p458 = pneg %p198
        %p459 = pneg %p195
        %p460 = pneg %p219
        %p461 = pneg %p216
        %p462 = pneg %p245
        %p463 = pneg %p242
        %s464 = sand.u32 %s232, 1
        %s465 = scalar_lea.sflag [#allocation7], %s464
        %s466 = sand.u32 %s232, 1
        %s467 = smul.addr %s466, 16
        %s468 = scalar_lea.vmem [#allocation19], %s467
        %v469 = vld [vmem:[%s398] sm:$0xff]
        %v470 = vld [vmem:[%s398 + $0x8] sm:$0xff]
        %v471 = vld [vmem:[%s398 + $0x10] sm:$0xff]
        %v472 = vld [vmem:[#allocation14] sm:$0xff]
        %v473 = vld [vmem:[#allocation14 + $0x8] sm:$0xff]
        %v474 = vld [vmem:[#allocation14 + $0x10] sm:$0xff]
        %v475 = vld [vmem:[#allocation14 + $0x18] sm:$0xff]
        %vm476 = vcmask 261120
        %v478 = vsel %vm476, %v469, 0
        %v481 = vsel %vm476, %v470, 0
        %v484 = vsel %vm476, %v471, 0
        %486 = vmatpush.msra.mxu0 0.0
        %487 = vmatpush.msra.mxu0 0.0
        %488 = vmatpush.msra.mxu0 0.0
        %489 = vmatpush.msra.mxu0 0.0
        %490 = vmatpush.msra.mxu0 0.0
        %491 = vmatpush.msra.mxu0 0.0
        %492 = vmatpush.msra.mxu0 0.0
        %493 = vmatpush.msra.mxu0 0.0
        %494 = vmatpush.msra.mxu0 0.0
        %495 = vmatpush.msra.mxu0 0.0
        %496 = vmatpush.msra.mxu0 0.0
        %497 = vmatpush.msra.mxu0 0.0
        %498 = vmatpush.msra.mxu0 %v475
        %499 = vmatpush.msra.mxu0 %v474
        %500 = vmatpush.msra.mxu0 %v473
        %501 = vmatpush.msra.mxu0 %v472
        %502 = vmatmul.f32.gmra.mxu0 %v478
        %v503 = vpop.f32.mrf.mxu0
        %v504 = vadd.f32 0.0, %v503
        %505 = vmatmul.f32.gmra.mxu0 %v481
        %v506 = vpop.f32.mrf.mxu0
        %v507 = vadd.f32 0.0, %v506
        %508 = vmatmul.f32.gmra.mxu0 %v484
        %v509 = vpop.f32.mrf.mxu0
        %v510 = vadd.f32 0.0, %v509
        %511 = vdwg.mxu0
        %v512 = vld [vmem:[#allocation16] sm:$0xff]
        %v513 = vld [vmem:[#allocation16 + $0x8] sm:$0xff]
        %v514 = vld [vmem:[#allocation16 + $0x10] sm:$0xff]
        %v515 = vld [vmem:[#allocation16 + $0x18] sm:$0xff]
        %516 = vmatpush.msra.mxu0 0.0
        %517 = vmatpush.msra.mxu0 0.0
        %518 = vmatpush.msra.mxu0 0.0
        %519 = vmatpush.msra.mxu0 0.0
        %520 = vmatpush.msra.mxu0 0.0
        %521 = vmatpush.msra.mxu0 0.0
        %522 = vmatpush.msra.mxu0 0.0
        %523 = vmatpush.msra.mxu0 0.0
        %524 = vmatpush.msra.mxu0 0.0
        %525 = vmatpush.msra.mxu0 0.0
        %526 = vmatpush.msra.mxu0 0.0
        %527 = vmatpush.msra.mxu0 0.0
        %528 = vmatpush.msra.mxu0 %v515
        %529 = vmatpush.msra.mxu0 %v514
        %530 = vmatpush.msra.mxu0 %v513
        %531 = vmatpush.msra.mxu0 %v512
        %532 = vmatmul.f32.gmra.mxu0 %v478
        %v533 = vpop.f32.mrf.mxu0
        %v534 = vadd.f32 0.0, %v533
        %535 = vmatmul.f32.gmra.mxu0 %v481
        %v536 = vpop.f32.mrf.mxu0
        %v537 = vadd.f32 0.0, %v536
        %538 = vmatmul.f32.gmra.mxu0 %v484
        %v539 = vpop.f32.mrf.mxu0
        %v540 = vadd.f32 0.0, %v539
        %541 = vdwg.mxu0
        %v542 = vsel %vm476, %v469, 0.0
        %v543 = vsel %vm476, %v470, 0.0
        %v544 = vadd.f32 %v542, %v543
        %v545 = vsel %vm476, %v471, 0.0
        %v546 = vadd.f32 %v544, %v545
        %v547 = vrot.slane %v546, 4
        %v548 = vadd.f32 %v546, %v547
        %v549 = vrot.slane %v548, 2
        %v550 = vadd.f32 %v548, %v549
        %v551 = vrot.slane %v550, 1
        %v552 = vadd.f32 %v550, %v551
        %v553 = vmul.f32 %v552, 0.0625
        %v554 = vsel %vm476, %v504, 0.0
        %v555 = vsel %vm476, %v507, 0.0
        %v556 = vadd.f32 %v554, %v555
        %v557 = vsel %vm476, %v510, 0.0
        %v558 = vadd.f32 %v556, %v557
        %v559 = vrot.slane %v558, 4
        %v560 = vadd.f32 %v558, %v559
        %v561 = vrot.slane %v560, 2
        %v562 = vadd.f32 %v560, %v561
        %v563 = vrot.slane %v562, 1
        %v564 = vadd.f32 %v562, %v563
        %v565 = vmul.f32 %v564, 0.0625
        %v566 = vsel %vm476, %v534, 0.0
        %v567 = vsel %vm476, %v537, 0.0
        %v568 = vadd.f32 %v566, %v567
        %v569 = vsel %vm476, %v540, 0.0
        %v570 = vadd.f32 %v568, %v569
        %v571 = vrot.slane %v570, 4
        %v572 = vadd.f32 %v570, %v571
        %v573 = vrot.slane %v572, 2
        %v574 = vadd.f32 %v572, %v573
        %v575 = vrot.slane %v574, 1
        %v576 = vadd.f32 %v574, %v575
        %v577 = vmul.f32 %v576, 0.0625
        %v578 = vlaneseq
        %v579 = vshrl.u32 %v578, 7
        %v580 = vadd.s32 %v579, 8
        %v581 = vadd.s32 %v579, 16
        %vm582 = vcmp.eq.s32.totalorder %v579, 16
        %vm583 = vcmp.eq.s32.totalorder %v580, 16
        %vm584 = vcmp.eq.s32.totalorder %v581, 16
        %v585 = vld [vmem:[#allocation8] sm:$0xff]
        %v586 = vld [vmem:[#allocation8 + $0x8] sm:$0xff]
        %v587 = vld [vmem:[#allocation8 + $0x10] sm:$0xff]
        %v588 = vadd.f32 %v504, %v585
        %v589 = vadd.f32 %v507, %v586
        %v590 = vadd.f32 %v510, %v587
        %v591 = vsel %vm582, %v565, 0.0
        %v592 = vsel %vm583, %v565, 0.0
        %v593 = vsel %vm584, %v565, 0.0
        %v594 = vadd.f32 %v588, %v591
        %v595 = vadd.f32 %v589, %v592
        %v596 = vadd.f32 %v590, %v593
        %v597 = vld [vmem:[#allocation10] sm:$0xff]
        %v598 = vld [vmem:[#allocation10 + $0x8] sm:$0xff]
        %v599 = vld [vmem:[#allocation10 + $0x10] sm:$0xff]
        %v600 = vadd.f32 %v534, %v597
        %v601 = vadd.f32 %v537, %v598
        %v602 = vadd.f32 %v540, %v599
        %v603 = vsel %vm582, %v577, 0.0
        %v604 = vsel %vm583, %v577, 0.0
        %v605 = vsel %vm584, %v577, 0.0
        %v606 = vadd.f32 %v600, %v603
        %v607 = vadd.f32 %v601, %v604
        %v608 = vadd.f32 %v602, %v605
        %609 = vst.msk [vmem:[#allocation3] sm:$0xff] %vm476, %v594
        %610 = vst.msk [vmem:[#allocation3 + $0x8] sm:$0xff] %vm476, %v595
        %611 = vst.msk [vmem:[#allocation3 + $0x10] sm:$0xff] %vm476, %v596
        %612 = vst.msk [vmem:[#allocation4] sm:$0xff] %vm476, %v606
        %613 = vst.msk [vmem:[#allocation4 + $0x8] sm:$0xff] %vm476, %v607
        %614 = vst.msk [vmem:[#allocation4 + $0x10] sm:$0xff] %vm476, %v608
        %v615 = vld [vmem:[#allocation13] sm:$0xff]
        %v616 = vld [vmem:[#allocation13 + $0x8] sm:$0xff]
        %v617 = vld [vmem:[#allocation13 + $0x10] sm:$0xff]
        %v618 = vld [vmem:[#allocation13 + $0x18] sm:$0xff]
        %v620 = vsel %vm476, %v553, 0
        %622 = vmatpush.msra.mxu0 0.0
        %623 = vmatpush.msra.mxu0 0.0
        %624 = vmatpush.msra.mxu0 0.0
        %625 = vmatpush.msra.mxu0 0.0
        %626 = vmatpush.msra.mxu0 0.0
        %627 = vmatpush.msra.mxu0 0.0
        %628 = vmatpush.msra.mxu0 0.0
        %629 = vmatpush.msra.mxu0 0.0
        %630 = vmatpush.msra.mxu0 0.0
        %631 = vmatpush.msra.mxu0 0.0
        %632 = vmatpush.msra.mxu0 0.0
        %633 = vmatpush.msra.mxu0 0.0
        %634 = vmatpush.msra.mxu0 %v618
        %635 = vmatpush.msra.mxu0 %v617
        %636 = vmatpush.msra.mxu0 %v616
        %637 = vmatpush.msra.mxu0 %v615
        %638 = vmatmul.f32.gmra.mxu0 %v620
        %v639 = vpop.f32.mrf.mxu0
        %v640 = vadd.f32 0.0, %v639
        %641 = vdwg.mxu0
        %v642 = vld [vmem:[#allocation11] sm:$0xff]
        %v643 = vld [vmem:[#allocation11 + $0x8] sm:$0xff]
        %vm644 = vcmp.eq.s32.totalorder %v579, 0
        %vm645 = vcmp.eq.s32.totalorder %v580, 0
        %v646 = vperm.slane %v640, 0
        %v647 = vsel %vm644, %v646, 0.0
        %v648 = vsel %vm645, %v646, 0.0
        %v649 = vadd.f32 %v642, %v647
        %v650 = vadd.f32 %v643, %v648
        %651 = vst.msk [vmem:[#allocation2] sm:$0xff] %vm476, %v649
        %652 = vst.msk [vmem:[#allocation2 + $0x8] sm:$0xff] %vm476, %v650
        %v653 = vlaneseq
        %v654 = vand.u32 %v653, 127
        %vm655 = vcmp.gt.s32.totalorder %v654, 16
        %v656 = vsel %vm655, -1e+30, 0.0
        %v657 = vld [vmem:[#allocation2] sm:$0xff]
        %v658 = vld [vmem:[#allocation2 + $0x8] sm:$0xff]
        %v659 = vld [vmem:[#allocation3] sm:$0xff]
        %v660 = vld [vmem:[#allocation3 + $0x8] sm:$0xff]
        %v661 = vld [vmem:[#allocation3 + $0x10] sm:$0xff]
        %v662 = vld [vmem:[#allocation4] sm:$0xff]
        %v663 = vld [vmem:[#allocation4 + $0x8] sm:$0xff]
        %v664 = vld [vmem:[#allocation4 + $0x10] sm:$0xff]
        %vm665 = vcmask 64512
        %v667 = vsel %vm665, %v657, 0
        %v670 = vsel %vm665, %v658, 0
        %v673 = vsel %vm665, %v659, 0
        %v676 = vsel %vm665, %v660, 0
        %v679 = vsel %vm665, %v661, 0
        %681 = vmatpush.xpose.msra.mxu0 0.0
        %682 = vmatpush.xpose.msra.mxu0 0.0
        %683 = vmatpush.xpose.msra.mxu0 0.0
        %684 = vmatpush.xpose.msra.mxu0 0.0
        %685 = vmatpush.xpose.msra.mxu0 0.0
        %686 = vmatpush.xpose.msra.mxu0 0.0
        %687 = vmatpush.xpose.msra.mxu0 0.0
        %688 = vmatpush.xpose.msra.mxu0 0.0
        %689 = vmatpush.xpose.msra.mxu0 0.0
        %690 = vmatpush.xpose.msra.mxu0 0.0
        %691 = vmatpush.xpose.msra.mxu0 0.0
        %692 = vmatpush.xpose.msra.mxu0 0.0
        %693 = vmatpush.xpose.msra.mxu0 0.0
        %694 = vmatpush.xpose.msra.mxu0 %v679
        %695 = vmatpush.xpose.msra.mxu0 %v676
        %696 = vmatpush.xpose.msra.mxu0 %v673
        %697 = vmatmul.f32.gmra.mxu0 %v667
        %v698 = vpop.f32.mrf.mxu0
        %v699 = vadd.f32 %v656, %v698
        %700 = vmatmul.f32.gmra.mxu0 %v670
        %v701 = vpop.f32.mrf.mxu0
        %v702 = vadd.f32 %v656, %v701
        %703 = vdwg.mxu0
        %vm704 = vcmask 195584
        %v705 = vsel %vm704, %v699, -inf
        %706 = vmax.xlane.f32.xlu0 %v705
        %v707 = vpop.xlane.xlu0 %706
        %v708 = vsel %vm704, %v702, -inf
        %709 = vmax.xlane.f32.xlu0 %v708
        %v710 = vpop.xlane.xlu0 %709
        %v711 = vsub.f32 %v699, %v707
        %v712 = vsub.f32 %v702, %v710
        %v713 = vmul.f32 %v711, 1.442695
        %v714 = vpow.pop %v713
        %v715 = vmul.f32 %v712, 1.442695
        %v716 = vpow.pop %v715
        %v717 = vsel %vm704, %v714, 0.0
        %718 = vadd.xlane.f32.xlu0 %v717
        %v719 = vpop.xlane.xlu0 %718
        %v720 = vsel %vm704, %v716, 0.0
        %721 = vadd.xlane.f32.xlu0 %v720
        %v722 = vpop.xlane.xlu0 %721
        %v723 = vrcp.pop %v719
        %v724 = vmul.f32 %v719, %v723
        %v725 = vsub.f32 1.0, %v724
        %v726 = vmul.f32 %v723, %v725
        %v727 = vadd.f32 %v723, %v726
        %vm728 = vweird.f32 %v719
        %vm729 = vweird.f32 %v723
        %vm730 = vmor %vm728, %vm729
        %v731 = vsel %vm730, %v723, %v727
        %v732 = vand.u32 2147483647, %v719
        %vm733 = vcmp.eq.f32.partialorder %v732, 8.507059e+37
        %v734 = vand.u32 %v719, 2147483648
        %v735 = vor.u32 1.1754944e-38, %v734
        %v736 = vsel %vm733, %v735, %v731
        %v737 = vmul.f32 %v714, %v736
        %v738 = vrcp.pop %v722
        %v739 = vmul.f32 %v722, %v738
        %v740 = vsub.f32 1.0, %v739
        %v741 = vmul.f32 %v738, %v740
        %v742 = vadd.f32 %v738, %v741
        %vm743 = vweird.f32 %v722
        %vm744 = vweird.f32 %v738
        %vm745 = vmor %vm743, %vm744
        %v746 = vsel %vm745, %v738, %v742
        %v747 = vand.u32 2147483647, %v722
        %vm748 = vcmp.eq.f32.partialorder %v747, 8.507059e+37
        %v749 = vand.u32 %v722, 2147483648
        %v750 = vor.u32 1.1754944e-38, %v749
        %v751 = vsel %vm748, %v750, %v746
        %v752 = vmul.f32 %v716, %v751
        %v754 = vsel %vm704, %v737, 0
        %v757 = vsel %vm704, %v752, 0
        %759 = vmatpush.msra.mxu0 0.0
        %760 = vmatpush.msra.mxu0 0.0
        %761 = vmatpush.msra.mxu0 0.0
        %762 = vmatpush.msra.mxu0 0.0
        %763 = vmatpush.msra.mxu0 0.0
        %764 = vmatpush.msra.mxu0 0.0
        %765 = vmatpush.msra.mxu0 0.0
        %766 = vmatpush.msra.mxu0 0.0
        %767 = vmatpush.msra.mxu0 0.0
        %768 = vmatpush.msra.mxu0 0.0
        %769 = vmatpush.msra.mxu0 0.0
        %770 = vmatpush.msra.mxu0 0.0
        %771 = vmatpush.msra.mxu0 0.0
        %772 = vmatpush.msra.mxu0 %v664
        %773 = vmatpush.msra.mxu0 %v663
        %774 = vmatpush.msra.mxu0 %v662
        %775 = vmatmul.f32.gmra.mxu0 %v754
        %v776 = vpop.f32.mrf.mxu0
        %v777 = vadd.f32 0.0, %v776
        %778 = vmatmul.f32.gmra.mxu0 %v757
        %v779 = vpop.f32.mrf.mxu0
        %v780 = vadd.f32 0.0, %v779
        %781 = vdwg.mxu0
        %v782 = vld [vmem:[#allocation17] sm:$0xff]
        %v783 = vld [vmem:[#allocation2] sm:$0xff]
        %v784 = vld [vmem:[#allocation2 + $0x8] sm:$0xff]
        %v785 = vld [vmem:[#allocation3] sm:$0xff]
        %v786 = vld [vmem:[#allocation3 + $0x8] sm:$0xff]
        %v787 = vld [vmem:[#allocation3 + $0x10] sm:$0xff]
        %v788 = vld [vmem:[#allocation4] sm:$0xff]
        %v789 = vld [vmem:[#allocation4 + $0x8] sm:$0xff]
        %v790 = vld [vmem:[#allocation4 + $0x10] sm:$0xff]
        %793 = vrot.lane.b32.xlu0 %v783, 120
        %v794 = vpop.permute.xlu0 %793
        %795 = vrot.lane.b32.xlu0 %v784, 120
        %v796 = vpop.permute.xlu0 %795
        %800 = vrot.lane.b32.xlu0 %v785, 120
        %v801 = vpop.permute.xlu0 %800
        %802 = vrot.lane.b32.xlu0 %v786, 120
        %v803 = vpop.permute.xlu0 %802
        %804 = vrot.lane.b32.xlu0 %v787, 120
        %v805 = vpop.permute.xlu0 %804
        %v806 = vsel %vm665, %v794, 0
        %v808 = vsel %vm665, %v796, 0
        %v810 = vsel %vm665, %v801, 0
        %v812 = vsel %vm665, %v803, 0
        %v814 = vsel %vm665, %v805, 0
        %816 = vmatpush.xpose.msra.mxu0 0.0
        %817 = vmatpush.xpose.msra.mxu0 0.0
        %818 = vmatpush.xpose.msra.mxu0 0.0
        %819 = vmatpush.xpose.msra.mxu0 0.0
        %820 = vmatpush.xpose.msra.mxu0 0.0
        %821 = vmatpush.xpose.msra.mxu0 0.0
        %822 = vmatpush.xpose.msra.mxu0 0.0
        %823 = vmatpush.xpose.msra.mxu0 0.0
        %824 = vmatpush.xpose.msra.mxu0 0.0
        %825 = vmatpush.xpose.msra.mxu0 0.0
        %826 = vmatpush.xpose.msra.mxu0 0.0
        %827 = vmatpush.xpose.msra.mxu0 0.0
        %828 = vmatpush.xpose.msra.mxu0 0.0
        %829 = vmatpush.xpose.msra.mxu0 %v814
        %830 = vmatpush.xpose.msra.mxu0 %v812
        %831 = vmatpush.xpose.msra.mxu0 %v810
        %832 = vmatmul.f32.gmra.mxu0 %v806
        %v833 = vpop.f32.mrf.mxu0
        %v834 = vadd.f32 %v656, %v833
        %835 = vmatmul.f32.gmra.mxu0 %v808
        %v836 = vpop.f32.mrf.mxu0
        %v837 = vadd.f32 %v656, %v836
        %838 = vdwg.mxu0
        %v839 = vsel %vm704, %v834, -inf
        %840 = vmax.xlane.f32.xlu0 %v839
        %v841 = vpop.xlane.xlu0 %840
        %v842 = vsel %vm704, %v837, -inf
        %843 = vmax.xlane.f32.xlu0 %v842
        %v844 = vpop.xlane.xlu0 %843
        %v845 = vsub.f32 %v834, %v841
        %v846 = vsub.f32 %v837, %v844
        %v847 = vmul.f32 %v845, 1.442695
        %v848 = vpow.pop %v847
        %v849 = vmul.f32 %v846, 1.442695
        %v850 = vpow.pop %v849
        %v851 = vsel %vm704, %v848, 0.0
        %852 = vadd.xlane.f32.xlu0 %v851
        %v853 = vpop.xlane.xlu0 %852
        %v854 = vsel %vm704, %v850, 0.0
        %855 = vadd.xlane.f32.xlu0 %v854
        %v856 = vpop.xlane.xlu0 %855
        %v857 = vrcp.pop %v853
        %v858 = vmul.f32 %v853, %v857
        %v859 = vsub.f32 1.0, %v858
        %v860 = vmul.f32 %v857, %v859
        %v861 = vadd.f32 %v857, %v860
        %vm862 = vweird.f32 %v853
        %vm863 = vweird.f32 %v857
        %vm864 = vmor %vm862, %vm863
        %v865 = vsel %vm864, %v857, %v861
        %v866 = vand.u32 2147483647, %v853
        %vm867 = vcmp.eq.f32.partialorder %v866, 8.507059e+37
        %v868 = vand.u32 %v853, 2147483648
        %v869 = vor.u32 1.1754944e-38, %v868
        %v870 = vsel %vm867, %v869, %v865
        %v871 = vmul.f32 %v848, %v870
        %v872 = vrcp.pop %v856
        %v873 = vmul.f32 %v856, %v872
        %v874 = vsub.f32 1.0, %v873
        %v875 = vmul.f32 %v872, %v874
        %v876 = vadd.f32 %v872, %v875
        %vm877 = vweird.f32 %v856
        %vm878 = vweird.f32 %v872
        %vm879 = vmor %vm877, %vm878
        %v880 = vsel %vm879, %v872, %v876
        %v881 = vand.u32 2147483647, %v856
        %vm882 = vcmp.eq.f32.partialorder %v881, 8.507059e+37
        %v883 = vand.u32 %v856, 2147483648
        %v884 = vor.u32 1.1754944e-38, %v883
        %v885 = vsel %vm882, %v884, %v880
        %v886 = vmul.f32 %v850, %v885
        %890 = vrot.lane.b32.xlu0 %v788, 120
        %v891 = vpop.permute.xlu0 %890
        %892 = vrot.lane.b32.xlu0 %v789, 120
        %v893 = vpop.permute.xlu0 %892
        %894 = vrot.lane.b32.xlu0 %v790, 120
        %v895 = vpop.permute.xlu0 %894
        %v900 = vsel %vm704, %v871, 0
        %v903 = vsel %vm704, %v886, 0
        %905 = vmatpush.msra.mxu0 0.0
        %906 = vmatpush.msra.mxu0 0.0
        %907 = vmatpush.msra.mxu0 0.0
        %908 = vmatpush.msra.mxu0 0.0
        %909 = vmatpush.msra.mxu0 0.0
        %910 = vmatpush.msra.mxu0 0.0
        %911 = vmatpush.msra.mxu0 0.0
        %912 = vmatpush.msra.mxu0 0.0
        %913 = vmatpush.msra.mxu0 0.0
        %914 = vmatpush.msra.mxu0 0.0
        %915 = vmatpush.msra.mxu0 0.0
        %916 = vmatpush.msra.mxu0 0.0
        %917 = vmatpush.msra.mxu0 0.0
        %918 = vmatpush.msra.mxu0 %v895
        %919 = vmatpush.msra.mxu0 %v893
        %920 = vmatpush.msra.mxu0 %v891
        %921 = vmatmul.f32.gmra.mxu0 %v900
        %v922 = vpop.f32.mrf.mxu0
        %v923 = vadd.f32 0.0, %v922
        %924 = vmatmul.f32.gmra.mxu0 %v903
        %v925 = vpop.f32.mrf.mxu0
        %v926 = vadd.f32 0.0, %v925
        %927 = vdwg.mxu0
        %v928 = vld [vmem:[#allocation17 + $0x8] sm:$0xff]
        %v930 = vsel %vm665, %v923, 0
        %v933 = vsel %vm665, %v926, 0
        %935 = vmatpush.msra.mxu0 0.0
        %936 = vmatpush.msra.mxu0 0.0
        %937 = vmatpush.msra.mxu0 0.0
        %938 = vmatpush.msra.mxu0 0.0
        %939 = vmatpush.msra.mxu0 0.0
        %940 = vmatpush.msra.mxu0 0.0
        %941 = vmatpush.msra.mxu0 0.0
        %942 = vmatpush.msra.mxu0 0.0
        %943 = vmatpush.msra.mxu0 0.0
        %944 = vmatpush.msra.mxu0 0.0
        %945 = vmatpush.msra.mxu0 0.0
        %946 = vmatpush.msra.mxu0 0.0
        %947 = vmatpush.msra.mxu0 0.0
        %948 = vmatpush.msra.mxu0 0.0
        %949 = vmatpush.msra.mxu0 0.0
        %950 = vmatpush.msra.mxu0 %v928
        %951 = vmatmul.f32.gmra.mxu0 %v930
        %v952 = vpop.f32.mrf.mxu0
        %v953 = vadd.f32 0.0, %v952
        %954 = vmatmul.f32.gmra.mxu0 %v933
        %v955 = vpop.f32.mrf.mxu0
        %v956 = vadd.f32 0.0, %v955
        %957 = vdwg.mxu0
        %v959 = vsel %vm665, %v777, 0
        %v962 = vsel %vm665, %v780, 0
        %964 = vmatpush.msra.mxu0 0.0
        %965 = vmatpush.msra.mxu0 0.0
        %966 = vmatpush.msra.mxu0 0.0
        %967 = vmatpush.msra.mxu0 0.0
        %968 = vmatpush.msra.mxu0 0.0
        %969 = vmatpush.msra.mxu0 0.0
        %970 = vmatpush.msra.mxu0 0.0
        %971 = vmatpush.msra.mxu0 0.0
        %972 = vmatpush.msra.mxu0 0.0
        %973 = vmatpush.msra.mxu0 0.0
        %974 = vmatpush.msra.mxu0 0.0
        %975 = vmatpush.msra.mxu0 0.0
        %976 = vmatpush.msra.mxu0 0.0
        %977 = vmatpush.msra.mxu0 0.0
        %978 = vmatpush.msra.mxu0 0.0
        %979 = vmatpush.msra.mxu0 %v782
        %980 = vmatmul.f32.gmra.mxu0 %v959
        %v981 = vpop.f32.mrf.mxu0
        %v982 = vadd.f32 %v953, %v981
        %983 = vmatmul.f32.gmra.mxu0 %v962
        %v984 = vpop.f32.mrf.mxu0
        %v985 = vadd.f32 %v956, %v984
        %986 = vdwg.mxu0
        %v987 = vld [vmem:[#allocation2] sm:$0xff]
        %v988 = vld [vmem:[#allocation2 + $0x8] sm:$0xff]
        %v989 = vld [vmem:[#allocation3] sm:$0xff]
        %v990 = vld [vmem:[#allocation3 + $0x8] sm:$0xff]
        %v991 = vld [vmem:[#allocation3 + $0x10] sm:$0xff]
        %v992 = vld [vmem:[#allocation4] sm:$0xff]
        %v993 = vld [vmem:[#allocation4 + $0x8] sm:$0xff]
        %v994 = vld [vmem:[#allocation4 + $0x10] sm:$0xff]
        %997 = vrot.lane.b32.xlu0 %v987, 112
        %v998 = vpop.permute.xlu0 %997
        %999 = vrot.lane.b32.xlu0 %v988, 112
        %v1000 = vpop.permute.xlu0 %999
        %1004 = vrot.lane.b32.xlu0 %v989, 112
        %v1005 = vpop.permute.xlu0 %1004
        %1006 = vrot.lane.b32.xlu0 %v990, 112
        %v1007 = vpop.permute.xlu0 %1006
        %1008 = vrot.lane.b32.xlu0 %v991, 112
        %v1009 = vpop.permute.xlu0 %1008
        %v1010 = vsel %vm665, %v998, 0
        %v1012 = vsel %vm665, %v1000, 0
        %v1014 = vsel %vm665, %v1005, 0
        %v1016 = vsel %vm665, %v1007, 0
        %v1018 = vsel %vm665, %v1009, 0
        %1020 = vmatpush.xpose.msra.mxu0 0.0
        %1021 = vmatpush.xpose.msra.mxu0 0.0
        %1022 = vmatpush.xpose.msra.mxu0 0.0
        %1023 = vmatpush.xpose.msra.mxu0 0.0
        %1024 = vmatpush.xpose.msra.mxu0 0.0
        %1025 = vmatpush.xpose.msra.mxu0 0.0
        %1026 = vmatpush.xpose.msra.mxu0 0.0
        %1027 = vmatpush.xpose.msra.mxu0 0.0
        %1028 = vmatpush.xpose.msra.mxu0 0.0
        %1029 = vmatpush.xpose.msra.mxu0 0.0
        %1030 = vmatpush.xpose.msra.mxu0 0.0
        %1031 = vmatpush.xpose.msra.mxu0 0.0
        %1032 = vmatpush.xpose.msra.mxu0 0.0
        %1033 = vmatpush.xpose.msra.mxu0 %v1018
        %1034 = vmatpush.xpose.msra.mxu0 %v1016
        %1035 = vmatpush.xpose.msra.mxu0 %v1014
        %1036 = vmatmul.f32.gmra.mxu0 %v1010
        %v1037 = vpop.f32.mrf.mxu0
        %v1038 = vadd.f32 %v656, %v1037
        %1039 = vmatmul.f32.gmra.mxu0 %v1012
        %v1040 = vpop.f32.mrf.mxu0
        %v1041 = vadd.f32 %v656, %v1040
        %1042 = vdwg.mxu0
        %v1043 = vsel %vm704, %v1038, -inf
        %1044 = vmax.xlane.f32.xlu0 %v1043
        %v1045 = vpop.xlane.xlu0 %1044
        %v1046 = vsel %vm704, %v1041, -inf
        %1047 = vmax.xlane.f32.xlu0 %v1046
        %v1048 = vpop.xlane.xlu0 %1047
        %v1049 = vsub.f32 %v1038, %v1045
        %v1050 = vsub.f32 %v1041, %v1048
        %v1051 = vmul.f32 %v1049, 1.442695
        %v1052 = vpow.pop %v1051
        %v1053 = vmul.f32 %v1050, 1.442695
        %v1054 = vpow.pop %v1053
        %v1055 = vsel %vm704, %v1052, 0.0
        %1056 = vadd.xlane.f32.xlu0 %v1055
        %v1057 = vpop.xlane.xlu0 %1056
        %v1058 = vsel %vm704, %v1054, 0.0
        %1059 = vadd.xlane.f32.xlu0 %v1058
        %v1060 = vpop.xlane.xlu0 %1059
        %v1061 = vrcp.pop %v1057
        %v1062 = vmul.f32 %v1057, %v1061
        %v1063 = vsub.f32 1.0, %v1062
        %v1064 = vmul.f32 %v1061, %v1063
        %v1065 = vadd.f32 %v1061, %v1064
        %vm1066 = vweird.f32 %v1057
        %vm1067 = vweird.f32 %v1061
        %vm1068 = vmor %vm1066, %vm1067
        %v1069 = vsel %vm1068, %v1061, %v1065
        %v1070 = vand.u32 2147483647, %v1057
        %vm1071 = vcmp.eq.f32.partialorder %v1070, 8.507059e+37
        %v1072 = vand.u32 %v1057, 2147483648
        %v1073 = vor.u32 1.1754944e-38, %v1072
        %v1074 = vsel %vm1071, %v1073, %v1069
        %v1075 = vmul.f32 %v1052, %v1074
        %v1076 = vrcp.pop %v1060
        %v1077 = vmul.f32 %v1060, %v1076
        %v1078 = vsub.f32 1.0, %v1077
        %v1079 = vmul.f32 %v1076, %v1078
        %v1080 = vadd.f32 %v1076, %v1079
        %vm1081 = vweird.f32 %v1060
        %vm1082 = vweird.f32 %v1076
        %vm1083 = vmor %vm1081, %vm1082
        %v1084 = vsel %vm1083, %v1076, %v1080
        %v1085 = vand.u32 2147483647, %v1060
        %vm1086 = vcmp.eq.f32.partialorder %v1085, 8.507059e+37
        %v1087 = vand.u32 %v1060, 2147483648
        %v1088 = vor.u32 1.1754944e-38, %v1087
        %v1089 = vsel %vm1086, %v1088, %v1084
        %v1090 = vmul.f32 %v1054, %v1089
        %1094 = vrot.lane.b32.xlu0 %v992, 112
        %v1095 = vpop.permute.xlu0 %1094
        %1096 = vrot.lane.b32.xlu0 %v993, 112
        %v1097 = vpop.permute.xlu0 %1096
        %1098 = vrot.lane.b32.xlu0 %v994, 112
        %v1099 = vpop.permute.xlu0 %1098
        %v1104 = vsel %vm704, %v1075, 0
        %v1107 = vsel %vm704, %v1090, 0
        %1109 = vmatpush.msra.mxu0 0.0
        %1110 = vmatpush.msra.mxu0 0.0
        %1111 = vmatpush.msra.mxu0 0.0
        %1112 = vmatpush.msra.mxu0 0.0
        %1113 = vmatpush.msra.mxu0 0.0
        %1114 = vmatpush.msra.mxu0 0.0
        %1115 = vmatpush.msra.mxu0 0.0
        %1116 = vmatpush.msra.mxu0 0.0
        %1117 = vmatpush.msra.mxu0 0.0
        %1118 = vmatpush.msra.mxu0 0.0
        %1119 = vmatpush.msra.mxu0 0.0
        %1120 = vmatpush.msra.mxu0 0.0
        %1121 = vmatpush.msra.mxu0 0.0
        %1122 = vmatpush.msra.mxu0 %v1099
        %1123 = vmatpush.msra.mxu0 %v1097
        %1124 = vmatpush.msra.mxu0 %v1095
        %1125 = vmatmul.f32.gmra.mxu0 %v1104
        %v1126 = vpop.f32.mrf.mxu0
        %v1127 = vadd.f32 0.0, %v1126
        %1128 = vmatmul.f32.gmra.mxu0 %v1107
        %v1129 = vpop.f32.mrf.mxu0
        %v1130 = vadd.f32 0.0, %v1129
        %1131 = vdwg.mxu0
        %v1132 = vld [vmem:[#allocation17 + $0x10] sm:$0xff]
        %v1134 = vsel %vm665, %v1127, 0
        %v1137 = vsel %vm665, %v1130, 0
        %1139 = vmatpush.msra.mxu0 0.0
        %1140 = vmatpush.msra.mxu0 0.0
        %1141 = vmatpush.msra.mxu0 0.0
        %1142 = vmatpush.msra.mxu0 0.0
        %1143 = vmatpush.msra.mxu0 0.0
        %1144 = vmatpush.msra.mxu0 0.0
        %1145 = vmatpush.msra.mxu0 0.0
        %1146 = vmatpush.msra.mxu0 0.0
        %1147 = vmatpush.msra.mxu0 0.0
        %1148 = vmatpush.msra.mxu0 0.0
        %1149 = vmatpush.msra.mxu0 0.0
        %1150 = vmatpush.msra.mxu0 0.0
        %1151 = vmatpush.msra.mxu0 0.0
        %1152 = vmatpush.msra.mxu0 0.0
        %1153 = vmatpush.msra.mxu0 0.0
        %1154 = vmatpush.msra.mxu0 %v1132
        %1155 = vmatmul.f32.gmra.mxu0 %v1134
        %v1156 = vpop.f32.mrf.mxu0
        %v1157 = vadd.f32 0.0, %v1156
        %1158 = vmatmul.f32.gmra.mxu0 %v1137
        %v1159 = vpop.f32.mrf.mxu0
        %v1160 = vadd.f32 0.0, %v1159
        %1161 = vdwg.mxu0
        %v1162 = vadd.f32 %v982, %v1157
        %v1163 = vadd.f32 %v985, %v1160
        %v1164 = vld [vmem:[#allocation2] sm:$0xff]
        %v1165 = vld [vmem:[#allocation2 + $0x8] sm:$0xff]
        %v1166 = vld [vmem:[#allocation3] sm:$0xff]
        %v1167 = vld [vmem:[#allocation3 + $0x8] sm:$0xff]
        %v1168 = vld [vmem:[#allocation3 + $0x10] sm:$0xff]
        %v1169 = vld [vmem:[#allocation4] sm:$0xff]
        %v1170 = vld [vmem:[#allocation4 + $0x8] sm:$0xff]
        %v1171 = vld [vmem:[#allocation4 + $0x10] sm:$0xff]
        %1174 = vrot.lane.b32.xlu0 %v1164, 104
        %v1175 = vpop.permute.xlu0 %1174
        %1176 = vrot.lane.b32.xlu0 %v1165, 104
        %v1177 = vpop.permute.xlu0 %1176
        %1181 = vrot.lane.b32.xlu0 %v1166, 104
        %v1182 = vpop.permute.xlu0 %1181
        %1183 = vrot.lane.b32.xlu0 %v1167, 104
        %v1184 = vpop.permute.xlu0 %1183
        %1185 = vrot.lane.b32.xlu0 %v1168, 104
        %v1186 = vpop.permute.xlu0 %1185
        %v1187 = vsel %vm665, %v1175, 0
        %v1189 = vsel %vm665, %v1177, 0
        %v1191 = vsel %vm665, %v1182, 0
        %v1193 = vsel %vm665, %v1184, 0
        %v1195 = vsel %vm665, %v1186, 0
        %1197 = vmatpush.xpose.msra.mxu0 0.0
        %1198 = vmatpush.xpose.msra.mxu0 0.0
        %1199 = vmatpush.xpose.msra.mxu0 0.0
        %1200 = vmatpush.xpose.msra.mxu0 0.0
        %1201 = vmatpush.xpose.msra.mxu0 0.0
        %1202 = vmatpush.xpose.msra.mxu0 0.0
        %1203 = vmatpush.xpose.msra.mxu0 0.0
        %1204 = vmatpush.xpose.msra.mxu0 0.0
        %1205 = vmatpush.xpose.msra.mxu0 0.0
        %1206 = vmatpush.xpose.msra.mxu0 0.0
        %1207 = vmatpush.xpose.msra.mxu0 0.0
        %1208 = vmatpush.xpose.msra.mxu0 0.0
        %1209 = vmatpush.xpose.msra.mxu0 0.0
        %1210 = vmatpush.xpose.msra.mxu0 %v1195
        %1211 = vmatpush.xpose.msra.mxu0 %v1193
        %1212 = vmatpush.xpose.msra.mxu0 %v1191
        %1213 = vmatmul.f32.gmra.mxu0 %v1187
        %v1214 = vpop.f32.mrf.mxu0
        %v1215 = vadd.f32 %v656, %v1214
        %1216 = vmatmul.f32.gmra.mxu0 %v1189
        %v1217 = vpop.f32.mrf.mxu0
        %v1218 = vadd.f32 %v656, %v1217
        %1219 = vdwg.mxu0
        %v1220 = vsel %vm704, %v1215, -inf
        %1221 = vmax.xlane.f32.xlu0 %v1220
        %v1222 = vpop.xlane.xlu0 %1221
        %v1223 = vsel %vm704, %v1218, -inf
        %1224 = vmax.xlane.f32.xlu0 %v1223
        %v1225 = vpop.xlane.xlu0 %1224
        %v1226 = vsub.f32 %v1215, %v1222
        %v1227 = vsub.f32 %v1218, %v1225
        %v1228 = vmul.f32 %v1226, 1.442695
        %v1229 = vpow.pop %v1228
        %v1230 = vmul.f32 %v1227, 1.442695
        %v1231 = vpow.pop %v1230
        %v1232 = vsel %vm704, %v1229, 0.0
        %1233 = vadd.xlane.f32.xlu0 %v1232
        %v1234 = vpop.xlane.xlu0 %1233
        %v1235 = vsel %vm704, %v1231, 0.0
        %1236 = vadd.xlane.f32.xlu0 %v1235
        %v1237 = vpop.xlane.xlu0 %1236
        %v1238 = vrcp.pop %v1234
        %v1239 = vmul.f32 %v1234, %v1238
        %v1240 = vsub.f32 1.0, %v1239
        %v1241 = vmul.f32 %v1238, %v1240
        %v1242 = vadd.f32 %v1238, %v1241
        %vm1243 = vweird.f32 %v1234
        %vm1244 = vweird.f32 %v1238
        %vm1245 = vmor %vm1243, %vm1244
        %v1246 = vsel %vm1245, %v1238, %v1242
        %v1247 = vand.u32 2147483647, %v1234
        %vm1248 = vcmp.eq.f32.partialorder %v1247, 8.507059e+37
        %v1249 = vand.u32 %v1234, 2147483648
        %v1250 = vor.u32 1.1754944e-38, %v1249
        %v1251 = vsel %vm1248, %v1250, %v1246
        %v1252 = vmul.f32 %v1229, %v1251
        %v1253 = vrcp.pop %v1237
        %v1254 = vmul.f32 %v1237, %v1253
        %v1255 = vsub.f32 1.0, %v1254
        %v1256 = vmul.f32 %v1253, %v1255
        %v1257 = vadd.f32 %v1253, %v1256
        %vm1258 = vweird.f32 %v1237
        %vm1259 = vweird.f32 %v1253
        %vm1260 = vmor %vm1258, %vm1259
        %v1261 = vsel %vm1260, %v1253, %v1257
        %v1262 = vand.u32 2147483647, %v1237
        %vm1263 = vcmp.eq.f32.partialorder %v1262, 8.507059e+37
        %v1264 = vand.u32 %v1237, 2147483648
        %v1265 = vor.u32 1.1754944e-38, %v1264
        %v1266 = vsel %vm1263, %v1265, %v1261
        %v1267 = vmul.f32 %v1231, %v1266
        %1271 = vrot.lane.b32.xlu0 %v1169, 104
        %v1272 = vpop.permute.xlu0 %1271
        %1273 = vrot.lane.b32.xlu0 %v1170, 104
        %v1274 = vpop.permute.xlu0 %1273
        %1275 = vrot.lane.b32.xlu0 %v1171, 104
        %v1276 = vpop.permute.xlu0 %1275
        %v1281 = vsel %vm704, %v1252, 0
        %v1284 = vsel %vm704, %v1267, 0
        %1286 = vmatpush.msra.mxu0 0.0
        %1287 = vmatpush.msra.mxu0 0.0
        %1288 = vmatpush.msra.mxu0 0.0
        %1289 = vmatpush.msra.mxu0 0.0
        %1290 = vmatpush.msra.mxu0 0.0
        %1291 = vmatpush.msra.mxu0 0.0
        %1292 = vmatpush.msra.mxu0 0.0
        %1293 = vmatpush.msra.mxu0 0.0
        %1294 = vmatpush.msra.mxu0 0.0
        %1295 = vmatpush.msra.mxu0 0.0
        %1296 = vmatpush.msra.mxu0 0.0
        %1297 = vmatpush.msra.mxu0 0.0
        %1298 = vmatpush.msra.mxu0 0.0
        %1299 = vmatpush.msra.mxu0 %v1276
        %1300 = vmatpush.msra.mxu0 %v1274
        %1301 = vmatpush.msra.mxu0 %v1272
        %1302 = vmatmul.f32.gmra.mxu0 %v1281
        %v1303 = vpop.f32.mrf.mxu0
        %v1304 = vadd.f32 0.0, %v1303
        %1305 = vmatmul.f32.gmra.mxu0 %v1284
        %v1306 = vpop.f32.mrf.mxu0
        %v1307 = vadd.f32 0.0, %v1306
        %1308 = vdwg.mxu0
        %v1309 = vld [vmem:[#allocation17 + $0x18] sm:$0xff]
        %v1311 = vsel %vm665, %v1304, 0
        %v1314 = vsel %vm665, %v1307, 0
        %1316 = vmatpush.msra.mxu0 0.0
        %1317 = vmatpush.msra.mxu0 0.0
        %1318 = vmatpush.msra.mxu0 0.0
        %1319 = vmatpush.msra.mxu0 0.0
        %1320 = vmatpush.msra.mxu0 0.0
        %1321 = vmatpush.msra.mxu0 0.0
        %1322 = vmatpush.msra.mxu0 0.0
        %1323 = vmatpush.msra.mxu0 0.0
        %1324 = vmatpush.msra.mxu0 0.0
        %1325 = vmatpush.msra.mxu0 0.0
        %1326 = vmatpush.msra.mxu0 0.0
        %1327 = vmatpush.msra.mxu0 0.0
        %1328 = vmatpush.msra.mxu0 0.0
        %1329 = vmatpush.msra.mxu0 0.0
        %1330 = vmatpush.msra.mxu0 0.0
        %1331 = vmatpush.msra.mxu0 %v1309
        %1332 = vmatmul.f32.gmra.mxu0 %v1311
        %v1333 = vpop.f32.mrf.mxu0
        %v1334 = vadd.f32 0.0, %v1333
        %1335 = vmatmul.f32.gmra.mxu0 %v1314
        %v1336 = vpop.f32.mrf.mxu0
        %v1337 = vadd.f32 0.0, %v1336
        %1338 = vdwg.mxu0
        %v1339 = vadd.f32 %v1162, %v1334
        %v1340 = vadd.f32 %v1163, %v1337
        %v1341 = vld [vmem:[%s8] sm:$0x1]
        %v1343 = vperm.slane %v1341, 0
        %v1345 = vadd.f32 %v1339, %v1343
        %v1346 = vadd.f32 %v1340, %v1343
        %vm1347 = vcmask 523264
        %1348 = vst.msk [vmem:[%s468] sm:$0xff] %vm1347, %v1345
        %1349 = vst.msk [vmem:[%s468 + $0x8] sm:$0xff] %vm1347, %v1346
        %s1350 = sand.u32 %s232, 1
        %s1351 = scalar_lea.sflag [#allocation7], %s1350
        %s1352 = sand.u32 %s232, 1
        %s1353 = smul.addr %s1352, 16
        %s1354 = scalar_lea.vmem [#allocation19], %s1353
        // Predicated region
        $region89: #{tpu_custom_call.1} parent=55 // pred_check
          %p1355 = pneg %p242
        $region90: #{tpu_custom_call.1} parent=55 // pred_check_branch
          %1357 = sbr.rel (%p1355) target = $region92
        $region91: #{tpu_custom_call.1} parent=55 // pred_region
          %1359 = vsyncadd %s1351, 0
          %s1360 = smul.addr %s30, 2
          %s1361 = smul.addr %s1360, 8
          %s1362 = scalar_lea.hbm %s9, %s1361
          %s1363 = sshll.u32 %s1354, 4
          %s1364 = int_to_ptr.vmem [resolvable:$true] %s1363
          %s1365 = sshll.u32 %s1362, 4
          %s1366 = int_to_ptr.hbm [resolvable:$true] %s1365
          %1371 = dma.vmem_to_hbm [thread:$0]  %s1364, 256, %s1366, %s1351, 128, 128, 8
        $region92: #{tpu_custom_call.1} parent=55 // pred_fallthru
          _
      $region56: #{tpu_custom_call.1} parent=5 // pred_fallthru
        _
      %p1372 = scmp.le.s32.totalorder 2, %s25
      // Predicated region
      $region93: #{tpu_custom_call.1} parent=5 // pred_check
        %p1373 = pneg %p1372
      $region94: #{tpu_custom_call.1} parent=5 // pred_check_branch
        %1375 = sbr.rel (%p1373) target = $region96
      $region95: #{tpu_custom_call.1} parent=5 // pred_region
        %s1376 = ssub.s32 %s25, 2
        // Predicated region
        $region97: #{tpu_custom_call.1} parent=95 // pred_check
          %p1377 = pneg %p248
        $region98: #{tpu_custom_call.1} parent=95 // pred_check_branch
          %1379 = sbr.rel (%p1377) target = $region100
        $region99: #{tpu_custom_call.1} parent=95 // pred_region
          %s1380 = sand.u32 %s233, 1
          %s1381 = scalar_lea.sflag [#allocation7], %s1380
          %s1382 = sand.u32 %s233, 1
          %s1383 = smul.addr %s1382, 16
          %s1384 = scalar_lea.vmem [#allocation19], %s1383
          %1386 = dma.done %s1381, 256
        $region100: #{tpu_custom_call.1} parent=95 // pred_fallthru
          _
      $region96: #{tpu_custom_call.1} parent=5 // pred_fallthru
        _
    $region6: #{tpu_custom_call.1} parent=1 // loop_footer
      %s29 = sadd.s32 1, %s25
    $region7: #{tpu_custom_call.1} parent=1 // loop_footer_branch
      %24 = sbr.rel target = $region3
    $region8: #{tpu_custom_call.1} parent=1 // loop_exit
      _
    %1387 = vsyncpa [#allocation6], 1
    %s1388 = scalar_lea.sflag [#allocation6], 1
    %1389 = vsyncpa %s1388, 1
    %1390 = vsyncpa [#allocation9], 1
    %1391 = vsyncpa [#allocation12], 1
    %1392 = vsyncpa [#allocation15], 1
    %1393 = vsyncpa [#allocation18], 1
    %1394 = vsyncpa [#allocation7], 1
    %s1395 = scalar_lea.sflag [#allocation7], 1
    %1396 = vsyncpa %s1395, 1

</llo_original>
